<compile_context>
chip_gen: v6e
topology: v6e:2x2x1
jax: 0.10.0
libtpu: 0.0.40
codegen_flags: <defaults>
</compile_context>

<pallas_src>
import math
import functools

import jax
import jax.numpy as jnp
from jax.experimental import pallas as pl
from jax.experimental.pallas import tpu as pltpu


def _layer_norm(y, gamma, beta, eps=1e-5):
    """One-pass LayerNorm: var = E[y^2] - E[y]^2 (halves cross-lane reductions)."""
    mu = jnp.mean(y, axis=-1, keepdims=True)
    ms = jnp.mean(y * y, axis=-1, keepdims=True)
    var = jnp.maximum(ms - mu * mu, 0.0)
    return (y - mu) * jax.lax.rsqrt(var + eps) * gamma + beta


def _encoder_layer_kernel(
    x_ref,                           # (Bt, S, D)  activations
    wqkv_ref, bqkv_ref,              # (D, 3D) bf16 (softmax scale folded into q part), (1, 3D) f32
    wo_ref, bo_ref,                  # (D, D) bf16 pre-transposed, (1, D) f32
    g1_ref, be1_ref,                 # layernorm1 (1, D)
    w1_ref, bf1_ref,                 # (D, F) bf16, (1, F)
    w2_ref, bf2_ref,                 # (F, D) bf16, (1, D)
    g2_ref, be2_ref,                 # layernorm2 (1, D)
    out_ref,                         # (Bt, S, D)
    heads_ref,                       # VMEM scratch (Bt*S, D) bf16: concatenated head outputs
    *, nhead, ff_chunk,
):
    f32, bf16 = jnp.float32, jnp.bfloat16
    bt, s, d = x_ref.shape           # static block shape; S must be a multiple of 8
    hd = d // nhead
    rows = bt * s

    x = x_ref[...].astype(f32).reshape(rows, d)            # f32 for residual / LN
    x_bf = x.astype(bf16)

    # ---- fused q/k/v projection: ONE (rows, D) x (D, 3D) MXU matmul ----
    qkv = jnp.dot(x_bf, wqkv_ref[...], preferred_element_type=f32) + bqkv_ref[...]
    qkv_bf = qkv.astype(bf16)                               # single cast pass
    q = qkv_bf[:, 0 * d:1 * d].reshape(bt, s, d)
    k = qkv_bf[:, 1 * d:2 * d].reshape(bt, s, d)
    v = qkv_bf[:, 2 * d:3 * d].reshape(bt, s, d)

    # ---- attention, per head, batched over the Bt batch rows of the block ----
    # Softmax scale is already folded into W_q.  Each head's output is stored at its
    # lane offset in a (rows, D) bf16 scratch so the output projection below becomes
    # a single full-depth matmul.
    # TODO(synk): batch all heads into one (Bt*nhead, S, hd) einsum (needs a minor-dim
    # split/merge relayout whose Mosaic lowering is shape-dependent; the per-head loop
    # with lane extracts is the always-lowering form).
    # TODO(synk): flash-style online-softmax tiling over S for long sequences.
    for h in range(nhead):
        sl = slice(h * hd, (h + 1) * hd)
        sc = jnp.einsum("bqd,bkd->bqk", q[:, :, sl], k[:, :, sl],
                        preferred_element_type=f32)         # (Bt, S, S) f32
        sc = sc - jnp.max(sc, axis=-1, keepdims=True)
        e = jnp.exp(sc)
        p = e * pl.reciprocal(jnp.sum(e, axis=-1, keepdims=True), approx=True)
        oh = jnp.einsum("bqk,bkd->bqd", p.astype(bf16), v[:, :, sl],
                        preferred_element_type=f32)         # (Bt, S, hd) f32
        heads_ref[:, sl] = oh.reshape(rows, hd).astype(bf16)

    # ---- output projection (full contraction depth D) + residual + LN1 ----
    attn = jnp.dot(heads_ref[...], wo_ref[...], preferred_element_type=f32) + bo_ref[...]
    y1 = _layer_norm(x + attn, g1_ref[...], be1_ref[...])   # dropout1 = identity (eval)
    y1_bf = y1.astype(bf16)

    # ---- feed-forward, tiled over F (dropout = identity) ----
    ff_total = w1_ref.shape[1]
    acc = jnp.zeros((rows, d), f32)
    for fi in range(ff_total // ff_chunk):
        fs = slice(fi * ff_chunk, (fi + 1) * ff_chunk)
        h1 = jnp.maximum(
            jnp.dot(y1_bf, w1_ref[:, fs], preferred_element_type=f32) + bf1_ref[:, fs],
            0.0)
        acc = acc + jnp.dot(h1.astype(bf16), w2_ref[fs, :], preferred_element_type=f32)
    h2 = acc + bf2_ref[...]

    # ---- residual + LN2 (dropout2 = identity) ----
    y2 = _layer_norm(y1 + h2, g2_ref[...], be2_ref[...])
    out_ref[...] = y2.reshape(bt, s, d).astype(out_ref.dtype)


# ------------------- host-side preparation & heuristics -------------------
def _prep_weights(p, nhead):
    """Pre-transpose, fuse q/k/v, fold the 1/sqrt(hd) softmax scale into W_q/b_q, cast to bf16."""
    bf16, f32 = jnp.bfloat16, jnp.float32
    D = p["wq"].shape[0]
    hd = D // nhead
    scale = 1.0 / math.sqrt(hd)
    wqkv = jnp.concatenate([(p["wq"] * scale).T, p["wk"].T, p["wv"].T], axis=1).astype(bf16)
    bqkv = jnp.concatenate([p["bq"] * scale, p["bk"], p["bv"]], axis=1).astype(f32)
    return dict(
        wqkv=wqkv, bqkv=bqkv,
        wo=p["wo"].T.astype(bf16), bo=p["bo"],
        g1=p["g1"], be1=p["be1"],
        w1=p["w1"].T.astype(bf16), bf1=p["bf1"],
        w2=p["w2"].T.astype(bf16), bf2=p["bf2"],
        g2=p["g2"], be2=p["be2"],
    )


def _ffn_chunk(F):
    """FFN tile width along dim_feedforward: largest lane-dense divisor of F <= 1024."""
    for tf in (1024, 896, 768, 640, 512, 384, 256, 128):
        if F % tf == 0:
            return tf
    return F


def _vmem_capacity_bytes():
    try:
        return int(pltpu.get_tpu_info().vmem_capacity_bytes)
    except Exception:
        return 64 * 1024 * 1024          # conservative: v7x per-TensorCore VMEM


def _nbytes(arrs):
    return int(sum(a.size * a.dtype.itemsize for a in arrs))


def _pick_block_b(B, S, D, ff_chunk, vmem_limit_bytes, weight_bytes):
    """Budget the batch-block from the full in-kernel working set (not just the x block)."""
    # Per-batch-row live bytes: f32 + bf16 copies of x / fused qkv / head-concat / y1 /
    # FFN accumulator, the per-head (S, S) f32 score temporaries, the (rows, ff_chunk)
    # FFN tile, plus the double-buffered in/out x blocks; ~1.5x headroom for compiler temps.
    per_row = int(1.5 * S * (60 * D + 6 * ff_chunk + 16 * S))
    avail = max(vmem_limit_bytes - int(1.25 * weight_bytes), per_row)
    bmax = max(1, avail // per_row)
    # Grid length >= 2 so both v7x TensorCores get work and the in/out DMA pipeline
    # overlaps; pick a grid length dividing B so no block computes on padded rows.
    g = max(2 if B >= 2 else 1, pl.cdiv(B, bmax))
    while B % g != 0 and g < B:
        g += 1
    return pl.cdiv(B, g)


# ------------------- entry points -------------------
def custom_transformer_encoder_layer_bsd(x_bsd, params, nhead, block_b=None):
    """Batch-first entry point: x_bsd is (B, S, D); returns (B, S, D)."""
    B, S, D = x_bsd.shape
    assert D % nhead == 0, "d_model must be divisible by nhead"
    # Perf note: d_model and dim_feedforward should be multiples of 128 (ideally 256
    # on v6e/v7x) so matmul operands and the output store stay lane-dense.

    prep = _prep_weights(params, nhead)
    order = ("wqkv", "bqkv", "wo", "bo", "g1", "be1", "w1", "bf1", "w2", "bf2", "g2", "be2")
    weights = [prep[k] for k in order]
    F = prep["w1"].shape[1]
    ff_chunk = _ffn_chunk(F)

    vmem_limit = min((_vmem_capacity_bytes() * 3) // 4, 96 * 1024 * 1024)
    if block_b is None:
        block_b = _pick_block_b(B, S, D, ff_chunk, vmem_limit, _nbytes(weights))
    # If a caller-supplied block_b does not divide B, the last block's padded rows are
    # computed on garbage (the output write is masked so results stay correct, but the
    # exp/LN work on those rows is wasted) — prefer divisors of B.
    grid = (pl.cdiv(B, block_b),)

    def _weight_spec(a):
        nd = a.ndim
        # Grid-invariant (revisited every step): single-buffer to halve weight VMEM.
        return pl.BlockSpec(a.shape, lambda b, _n=nd: (0,) * _n,
                            pipeline_mode=pl.Buffered(1))

    return pl.pallas_call(
        functools.partial(_encoder_layer_kernel, nhead=nhead, ff_chunk=ff_chunk),
        out_shape=jax.ShapeDtypeStruct((B, S, D), x_bsd.dtype),
        grid=grid,
        in_specs=[pl.BlockSpec((block_b, S, D), lambda b: (b, 0, 0))]
        + [_weight_spec(a) for a in weights],
        out_specs=pl.BlockSpec((block_b, S, D), lambda b: (b, 0, 0)),
        scratch_shapes=[pltpu.VMEM((block_b * S, D), jnp.bfloat16)],
        compiler_params=pltpu.CompilerParams(
            dimension_semantics=("parallel",),     # shard batch blocks across v7x's 2 TCs
            vmem_limit_bytes=vmem_limit,
        ),
    )(x_bsd, *weights)


def custom_transformer_encoder_layer(src_sbd, params, nhead, block_b=None):
    """PyTorch-parity entry point: src is (S, B, D) like nn.TransformerEncoderLayer.

    Callers holding batch-first activations should call
    custom_transformer_encoder_layer_bsd directly and skip these two HBM transposes.
    """
    x = jnp.transpose(src_sbd, (1, 0, 2))
    out = custom_transformer_encoder_layer_bsd(x, params, nhead, block_b)
    return jnp.transpose(out, (1, 0, 2))
    # TODO(synk): src_mask / src_key_padding_mask paths are not plumbed (None in this demo).


# ------------------- references (no Pallas) -------------------
def _reference_f32(src_sbd, p, nhead):
    """Full-f32 reference matching the PyTorch module semantics (eval mode)."""
    x = jnp.transpose(src_sbd, (1, 0, 2)).astype(jnp.float32)   # (B, S, D)
    B, S, D = x.shape
    hd = D // nhead
    scale = 1.0 / math.sqrt(hd)

    q = x @ p["wq"].T + p["bq"]
    k = x @ p["wk"].T + p["bk"]
    v = x @ p["wv"].T + p["bv"]
    q = q.reshape(B, S, nhead, hd).transpose(0, 2, 1, 3) * scale
    k = k.reshape(B, S, nhead, hd).transpose(0, 2, 1, 3)
    v = v.reshape(B, S, nhead, hd).transpose(0, 2, 1, 3)
    s = jnp.einsum("bhqd,bhkd->bhqk", q, k)
    pr = jax.nn.softmax(s, axis=-1)
    a = jnp.einsum("bhqk,bhkd->bhqd", pr, v).transpose(0, 2, 1, 3).reshape(B, S, D)
    a = a @ p["wo"].T + p["bo"]
    y = _layer_norm(x + a, p["g1"], p["be1"])
    h = jax.nn.relu(y @ p["w1"].T + p["bf1"]) @ p["w2"].T + p["bf2"]
    y = _layer_norm(y + h, p["g2"], p["be2"])
    return jnp.transpose(y, (1, 0, 2))


def _reference_mixed(src_sbd, params, nhead):
    """Same math / same bf16 cast points as the kernel (exact softmax divide)."""
    bf16, f32 = jnp.bfloat16, jnp.float32
    prep = _prep_weights(params, nhead)
    x = jnp.transpose(src_sbd, (1, 0, 2)).astype(f32)            # (B, S, D)
    B, S, D = x.shape
    hd = D // nhead
    rows = B * S

    x2 = x.reshape(rows, D)
    qkv = jnp.dot(x2.astype(bf16), prep["wqkv"], preferred_element_type=f32) + prep["bqkv"]
    qkv_bf = qkv.astype(bf16)
    q = qkv_bf[:, 0 * D:1 * D].reshape(B, S, D)
    k = qkv_bf[:, 1 * D:2 * D].reshape(B, S, D)
    v = qkv_bf[:, 2 * D:3 * D].reshape(B, S, D)

    heads = []
    for h in range(nhead):
        sl = slice(h * hd, (h + 1) * hd)
        sc = jnp.einsum("bqd,bkd->bqk", q[:, :, sl], k[:, :, sl],
                        preferred_element_type=f32)
        sc = sc - jnp.max(sc, axis=-1, keepdims=True)
        e = jnp.exp(sc)
        pr = e / jnp.sum(e, axis=-1, keepdims=True)
        oh = jnp.einsum("bqk,bkd->bqd", pr.astype(bf16), v[:, :, sl],
                        preferred_element_type=f32)
        heads.append(oh.reshape(rows, hd).astype(bf16))
    hcat = jnp.concatenate(heads, axis=-1)
    attn = jnp.dot(hcat, prep["wo"], preferred_element_type=f32) + prep["bo"]

    y1 = _layer_norm(x2 + attn, prep["g1"], prep["be1"])
    h1 = jnp.maximum(jnp.dot(y1.astype(bf16), prep["w1"],
                             preferred_element_type=f32) + prep["bf1"], 0.0)
    h2 = jnp.dot(h1.astype(bf16), prep["w2"], preferred_element_type=f32) + prep["bf2"]
    y2 = _layer_norm(y1 + h2, prep["g2"], prep["be2"])
    return jnp.transpose(y2.reshape(B, S, D), (1, 0, 2))


def _make_params(key, d_model, nhead, dim_feedforward):
    ks = jax.random.split(key, 8)

    def xavier(k, shape, gain):
        fan_out, fan_in = shape
        a = gain * math.sqrt(6.0 / (fan_in + fan_out))
        return jax.random.uniform(k, shape, jnp.float32, -a, a)

    D, F = d_model, dim_feedforward
    return {
        # attention projections (deterministic init)
        "wq": xavier(ks[0], (D, D), 1.0), "bq": jnp.zeros((1, D), jnp.float32),
        "wk": xavier(ks[1], (D, D), 1.0), "bk": jnp.zeros((1, D), jnp.float32),
        "wv": xavier(ks[2], (D, D), 1.0), "bv": jnp.zeros((1, D), jnp.float32),
        "wo": xavier(ks[3], (D, D), 1.0), "bo": jnp.zeros((1, D), jnp.float32),
        # layernorm1
        "g1": jnp.ones((1, D), jnp.float32), "be1": jnp.zeros((1, D), jnp.float32),
        # FFN (xavier_uniform gain=0.1, zero bias — matches _reset_parameters)
        "w1": xavier(ks[4], (F, D), 0.1), "bf1": jnp.zeros((1, F), jnp.float32),
        "w2": xavier(ks[5], (D, F), 0.1), "bf2": jnp.zeros((1, D), jnp.float32),
        # layernorm2
        "g2": jnp.ones((1, D), jnp.float32), "be2": jnp.zeros((1, D), jnp.float32),
    }


if __name__ == "__main__":
    # Small but lane-dense demo shapes (D, F multiples of 128; B >= 2 so the batch
    # grid has length >= 2 and both v7x TensorCores get work).
    S, B, D = 8, 4, 128          # seq, batch, d_model
    NHEAD, FF = 4, 256

    key = jax.random.PRNGKey(0)
    k_x, k_p = jax.random.split(key)
    src = jax.random.normal(k_x, (S, B, D), jnp.float32)     # PyTorch layout (S, B, D)
    params = _make_params(k_p, D, NHEAD, FF)

    out = custom_transformer_encoder_layer(src, params, NHEAD)
    out = jax.block_until_ready(out)
    assert out.shape == (S, B, D)
    assert bool(jnp.all(jnp.isfinite(out)))

    # Matched-precision check (same bf16 cast points; remaining differences are the
    # approximate EUP reciprocal in softmax and f32 accumulation order).
    ref_mixed = _reference_mixed(src, params, NHEAD)
    assert jnp.allclose(out, ref_mixed, atol=2e-2, rtol=2e-2), \
        "mismatch vs matched-precision reference"
    # Looser sanity check against full-f32 math (bf16 matmul inputs are an intentional
    # precision/perf trade, per the performance review).
    ref_f32 = _reference_f32(src, params, NHEAD)
    assert jnp.allclose(out, ref_f32, atol=1e-1, rtol=1e-1), \
        "mismatch vs f32 reference"

    print("KERNEL_OK")
</pallas_src>

<mosaic_0001>
module attributes {stable_mosaic.version = 11 : i64} {
  func.func @_encoder_layer_kernel(%arg0: i32, %arg1: memref<2x8x128xf32, #tpu.memory_space<vmem>>, %arg2: memref<128x384xbf16, #tpu.memory_space<vmem>>, %arg3: memref<1x384xf32, #tpu.memory_space<vmem>>, %arg4: memref<128x128xbf16, #tpu.memory_space<vmem>>, %arg5: memref<1x128xf32, #tpu.memory_space<vmem>>, %arg6: memref<1x128xf32, #tpu.memory_space<vmem>>, %arg7: memref<1x128xf32, #tpu.memory_space<vmem>>, %arg8: memref<128x256xbf16, #tpu.memory_space<vmem>>, %arg9: memref<1x256xf32, #tpu.memory_space<vmem>>, %arg10: memref<256x128xbf16, #tpu.memory_space<vmem>>, %arg11: memref<1x128xf32, #tpu.memory_space<vmem>>, %arg12: memref<1x128xf32, #tpu.memory_space<vmem>>, %arg13: memref<1x128xf32, #tpu.memory_space<vmem>>, %arg14: memref<2x8x128xf32, #tpu.memory_space<vmem>>, %arg15: memref<16x128xbf16, #tpu.memory_space<vmem>>) attributes {dimension_semantics = [#tpu.dimension_semantics<parallel>], iteration_bounds = array<i64: 2>, scalar_prefetch = 0 : i64, scratch_operands = 1 : i64, tpu.core_type = #tpu.core_type<tc>, window_params = [{transform_indices = @transform_0, window_bounds = array<i64: 2, 8, 128>}, {pipeline_mode = #tpu.pipeline_mode<synchronous>, transform_indices = @transform_1, window_bounds = array<i64: 128, 384>}, {pipeline_mode = #tpu.pipeline_mode<synchronous>, transform_indices = @transform_2, window_bounds = array<i64: 1, 384>}, {pipeline_mode = #tpu.pipeline_mode<synchronous>, transform_indices = @transform_3, window_bounds = array<i64: 128, 128>}, {pipeline_mode = #tpu.pipeline_mode<synchronous>, transform_indices = @transform_4, window_bounds = array<i64: 1, 128>}, {pipeline_mode = #tpu.pipeline_mode<synchronous>, transform_indices = @transform_5, window_bounds = array<i64: 1, 128>}, {pipeline_mode = #tpu.pipeline_mode<synchronous>, transform_indices = @transform_6, window_bounds = array<i64: 1, 128>}, {pipeline_mode = #tpu.pipeline_mode<synchronous>, transform_indices = @transform_7, window_bounds = array<i64: 128, 256>}, {pipeline_mode = #tpu.pipeline_mode<synchronous>, transform_indices = @transform_8, window_bounds = array<i64: 1, 256>}, {pipeline_mode = #tpu.pipeline_mode<synchronous>, transform_indices = @transform_9, window_bounds = array<i64: 256, 128>}, {pipeline_mode = #tpu.pipeline_mode<synchronous>, transform_indices = @transform_10, window_bounds = array<i64: 1, 128>}, {pipeline_mode = #tpu.pipeline_mode<synchronous>, transform_indices = @transform_11, window_bounds = array<i64: 1, 128>}, {pipeline_mode = #tpu.pipeline_mode<synchronous>, transform_indices = @transform_12, window_bounds = array<i64: 1, 128>}, {transform_indices = @transform_13, window_bounds = array<i64: 2, 8, 128>}]} {
    %c0 = arith.constant 0 : index
    %c0_0 = arith.constant 0 : index
    %c0_1 = arith.constant 0 : index
    %0 = vector.load %arg1[%c0, %c0_0, %c0_1] : memref<2x8x128xf32, #tpu.memory_space<vmem>>, vector<2x8x128xf32>
    %1 = vector.shape_cast %0 : vector<2x8x128xf32> to vector<16x128xf32>
    %2 = arith.truncf %1 : vector<16x128xf32> to vector<16x128xbf16>
    %c0_2 = arith.constant 0 : index
    %c0_3 = arith.constant 0 : index
    %3 = vector.load %arg2[%c0_2, %c0_3] : memref<128x384xbf16, #tpu.memory_space<vmem>>, vector<128x384xbf16>
    %cst = arith.constant dense<0.000000e+00> : vector<16x384xf32>
    %4 = tpu.matmul %2, %3, %cst {dimension_numbers = #tpu.dot_dimension_numbers<[1], [0], [0], [1], [0, 0, 1, 1], [], []>} : vector<16x128xbf16>, vector<128x384xbf16>, vector<16x384xf32> -> vector<16x384xf32>
    %c0_4 = arith.constant 0 : index
    %c0_5 = arith.constant 0 : index
    %5 = vector.load %arg3[%c0_4, %c0_5] : memref<1x384xf32, #tpu.memory_space<vmem>>, vector<1x384xf32>
    %6 = vector.broadcast %5 : vector<1x384xf32> to vector<16x384xf32>
    %7 = arith.addf %4, %6 : vector<16x384xf32>
    %8 = arith.truncf %7 : vector<16x384xf32> to vector<16x384xbf16>
    %9 = vector.extract_strided_slice %8 {offsets = [0, 0], sizes = [16, 128], strides = [1, 1]} : vector<16x384xbf16> to vector<16x128xbf16>
    %10 = vector.shape_cast %9 : vector<16x128xbf16> to vector<2x8x128xbf16>
    %11 = vector.extract_strided_slice %8 {offsets = [0, 128], sizes = [16, 128], strides = [1, 1]} : vector<16x384xbf16> to vector<16x128xbf16>
    %12 = vector.shape_cast %11 : vector<16x128xbf16> to vector<2x8x128xbf16>
    %13 = vector.extract_strided_slice %8 {offsets = [0, 256], sizes = [16, 128], strides = [1, 1]} : vector<16x384xbf16> to vector<16x128xbf16>
    %14 = vector.shape_cast %13 : vector<16x128xbf16> to vector<2x8x128xbf16>
    %15 = vector.extract_strided_slice %10 {offsets = [0, 0, 0], sizes = [2, 8, 32], strides = [1, 1, 1]} : vector<2x8x128xbf16> to vector<2x8x32xbf16>
    %16 = vector.extract_strided_slice %12 {offsets = [0, 0, 0], sizes = [2, 8, 32], strides = [1, 1, 1]} : vector<2x8x128xbf16> to vector<2x8x32xbf16>
    "tpu.trace_start"() <{level = 10 : i32, message = "bqd,bkd->bqk"}> : () -> ()
    %cst_6 = arith.constant dense<0.000000e+00> : vector<2x8x8xf32>
    %17 = tpu.matmul %15, %16, %cst_6 {dimension_numbers = #tpu.dot_dimension_numbers<[2], [2], [1], [1], [0, 0, 0, 1, 1, 1], [0], [0]>} : vector<2x8x32xbf16>, vector<2x8x32xbf16>, vector<2x8x8xf32> -> vector<2x8x8xf32>
    "tpu.trace_stop"() : () -> ()
    %cst_7 = arith.constant dense<0xFF800000> : vector<2x8xf32>
    %18 = vector.multi_reduction <maximumf>, %17, %cst_7 [2] : vector<2x8x8xf32> to vector<2x8xf32>
    %19 = vector.shape_cast %18 : vector<2x8xf32> to vector<2x8x1xf32>
    %20 = vector.broadcast %19 : vector<2x8x1xf32> to vector<2x8x8xf32>
    %21 = arith.subf %17, %20 : vector<2x8x8xf32>
    %22 = math.exp %21 : vector<2x8x8xf32>
    %cst_8 = arith.constant dense<0.000000e+00> : vector<2x8xf32>
    %23 = vector.multi_reduction <add>, %22, %cst_8 [2] : vector<2x8x8xf32> to vector<2x8xf32>
    %24 = vector.shape_cast %23 : vector<2x8xf32> to vector<2x8x1xf32>
    %25 = tpu.reciprocal %24 {approx = true} : vector<2x8x1xf32> -> vector<2x8x1xf32>
    %26 = vector.broadcast %25 : vector<2x8x1xf32> to vector<2x8x8xf32>
    %27 = arith.mulf %22, %26 : vector<2x8x8xf32>
    %28 = arith.truncf %27 : vector<2x8x8xf32> to vector<2x8x8xbf16>
    %29 = vector.extract_strided_slice %14 {offsets = [0, 0, 0], sizes = [2, 8, 32], strides = [1, 1, 1]} : vector<2x8x128xbf16> to vector<2x8x32xbf16>
    "tpu.trace_start"() <{level = 10 : i32, message = "bqk,bkd->bqd"}> : () -> ()
    %cst_9 = arith.constant dense<0.000000e+00> : vector<2x8x32xf32>
    %30 = tpu.matmul %28, %29, %cst_9 {dimension_numbers = #tpu.dot_dimension_numbers<[2], [1], [1], [2], [0, 0, 0, 1, 1, 2], [0], [0]>} : vector<2x8x8xbf16>, vector<2x8x32xbf16>, vector<2x8x32xf32> -> vector<2x8x32xf32>
    "tpu.trace_stop"() : () -> ()
    %31 = vector.shape_cast %30 : vector<2x8x32xf32> to vector<16x32xf32>
    %32 = arith.truncf %31 : vector<16x32xf32> to vector<16x32xbf16>
    %c0_10 = arith.constant 0 : index
    %c0_11 = arith.constant 0 : index
    %33 = vector.load %arg15[%c0_10, %c0_11] : memref<16x128xbf16, #tpu.memory_space<vmem>>, vector<16x32xbf16>
    tpu.vector_store %arg15[%c0_10, %c0_11], %32 {strides = array<i32>} : memref<16x128xbf16, #tpu.memory_space<vmem>>, vector<16x32xbf16>,
    %34 = vector.extract_strided_slice %10 {offsets = [0, 0, 32], sizes = [2, 8, 32], strides = [1, 1, 1]} : vector<2x8x128xbf16> to vector<2x8x32xbf16>
    %35 = vector.extract_strided_slice %12 {offsets = [0, 0, 32], sizes = [2, 8, 32], strides = [1, 1, 1]} : vector<2x8x128xbf16> to vector<2x8x32xbf16>
    "tpu.trace_start"() <{level = 10 : i32, message = "bqd,bkd->bqk"}> : () -> ()
    %cst_12 = arith.constant dense<0.000000e+00> : vector<2x8x8xf32>
    %36 = tpu.matmul %34, %35, %cst_12 {dimension_numbers = #tpu.dot_dimension_numbers<[2], [2], [1], [1], [0, 0, 0, 1, 1, 1], [0], [0]>} : vector<2x8x32xbf16>, vector<2x8x32xbf16>, vector<2x8x8xf32> -> vector<2x8x8xf32>
    "tpu.trace_stop"() : () -> ()
    %cst_13 = arith.constant dense<0xFF800000> : vector<2x8xf32>
    %37 = vector.multi_reduction <maximumf>, %36, %cst_13 [2] : vector<2x8x8xf32> to vector<2x8xf32>
    %38 = vector.shape_cast %37 : vector<2x8xf32> to vector<2x8x1xf32>
    %39 = vector.broadcast %38 : vector<2x8x1xf32> to vector<2x8x8xf32>
    %40 = arith.subf %36, %39 : vector<2x8x8xf32>
    %41 = math.exp %40 : vector<2x8x8xf32>
    %cst_14 = arith.constant dense<0.000000e+00> : vector<2x8xf32>
    %42 = vector.multi_reduction <add>, %41, %cst_14 [2] : vector<2x8x8xf32> to vector<2x8xf32>
    %43 = vector.shape_cast %42 : vector<2x8xf32> to vector<2x8x1xf32>
    %44 = tpu.reciprocal %43 {approx = true} : vector<2x8x1xf32> -> vector<2x8x1xf32>
    %45 = vector.broadcast %44 : vector<2x8x1xf32> to vector<2x8x8xf32>
    %46 = arith.mulf %41, %45 : vector<2x8x8xf32>
    %47 = arith.truncf %46 : vector<2x8x8xf32> to vector<2x8x8xbf16>
    %48 = vector.extract_strided_slice %14 {offsets = [0, 0, 32], sizes = [2, 8, 32], strides = [1, 1, 1]} : vector<2x8x128xbf16> to vector<2x8x32xbf16>
    "tpu.trace_start"() <{level = 10 : i32, message = "bqk,bkd->bqd"}> : () -> ()
    %cst_15 = arith.constant dense<0.000000e+00> : vector<2x8x32xf32>
    %49 = tpu.matmul %47, %48, %cst_15 {dimension_numbers = #tpu.dot_dimension_numbers<[2], [1], [1], [2], [0, 0, 0, 1, 1, 2], [0], [0]>} : vector<2x8x8xbf16>, vector<2x8x32xbf16>, vector<2x8x32xf32> -> vector<2x8x32xf32>
    "tpu.trace_stop"() : () -> ()
    %50 = vector.shape_cast %49 : vector<2x8x32xf32> to vector<16x32xf32>
    %51 = arith.truncf %50 : vector<16x32xf32> to vector<16x32xbf16>
    %c0_16 = arith.constant 0 : index
    %c32 = arith.constant 32 : index
    %52 = vector.load %arg15[%c0_16, %c32] : memref<16x128xbf16, #tpu.memory_space<vmem>>, vector<16x32xbf16>
    tpu.vector_store %arg15[%c0_16, %c32], %51 {strides = array<i32>} : memref<16x128xbf16, #tpu.memory_space<vmem>>, vector<16x32xbf16>,
    %53 = vector.extract_strided_slice %10 {offsets = [0, 0, 64], sizes = [2, 8, 32], strides = [1, 1, 1]} : vector<2x8x128xbf16> to vector<2x8x32xbf16>
    %54 = vector.extract_strided_slice %12 {offsets = [0, 0, 64], sizes = [2, 8, 32], strides = [1, 1, 1]} : vector<2x8x128xbf16> to vector<2x8x32xbf16>
    "tpu.trace_start"() <{level = 10 : i32, message = "bqd,bkd->bqk"}> : () -> ()
    %cst_17 = arith.constant dense<0.000000e+00> : vector<2x8x8xf32>
    %55 = tpu.matmul %53, %54, %cst_17 {dimension_numbers = #tpu.dot_dimension_numbers<[2], [2], [1], [1], [0, 0, 0, 1, 1, 1], [0], [0]>} : vector<2x8x32xbf16>, vector<2x8x32xbf16>, vector<2x8x8xf32> -> vector<2x8x8xf32>
    "tpu.trace_stop"() : () -> ()
    %cst_18 = arith.constant dense<0xFF800000> : vector<2x8xf32>
    %56 = vector.multi_reduction <maximumf>, %55, %cst_18 [2] : vector<2x8x8xf32> to vector<2x8xf32>
    %57 = vector.shape_cast %56 : vector<2x8xf32> to vector<2x8x1xf32>
    %58 = vector.broadcast %57 : vector<2x8x1xf32> to vector<2x8x8xf32>
    %59 = arith.subf %55, %58 : vector<2x8x8xf32>
    %60 = math.exp %59 : vector<2x8x8xf32>
    %cst_19 = arith.constant dense<0.000000e+00> : vector<2x8xf32>
    %61 = vector.multi_reduction <add>, %60, %cst_19 [2] : vector<2x8x8xf32> to vector<2x8xf32>
    %62 = vector.shape_cast %61 : vector<2x8xf32> to vector<2x8x1xf32>
    %63 = tpu.reciprocal %62 {approx = true} : vector<2x8x1xf32> -> vector<2x8x1xf32>
    %64 = vector.broadcast %63 : vector<2x8x1xf32> to vector<2x8x8xf32>
    %65 = arith.mulf %60, %64 : vector<2x8x8xf32>
    %66 = arith.truncf %65 : vector<2x8x8xf32> to vector<2x8x8xbf16>
    %67 = vector.extract_strided_slice %14 {offsets = [0, 0, 64], sizes = [2, 8, 32], strides = [1, 1, 1]} : vector<2x8x128xbf16> to vector<2x8x32xbf16>
    "tpu.trace_start"() <{level = 10 : i32, message = "bqk,bkd->bqd"}> : () -> ()
    %cst_20 = arith.constant dense<0.000000e+00> : vector<2x8x32xf32>
    %68 = tpu.matmul %66, %67, %cst_20 {dimension_numbers = #tpu.dot_dimension_numbers<[2], [1], [1], [2], [0, 0, 0, 1, 1, 2], [0], [0]>} : vector<2x8x8xbf16>, vector<2x8x32xbf16>, vector<2x8x32xf32> -> vector<2x8x32xf32>
    "tpu.trace_stop"() : () -> ()
    %69 = vector.shape_cast %68 : vector<2x8x32xf32> to vector<16x32xf32>
    %70 = arith.truncf %69 : vector<16x32xf32> to vector<16x32xbf16>
    %c0_21 = arith.constant 0 : index
    %c64 = arith.constant 64 : index
    %71 = vector.load %arg15[%c0_21, %c64] : memref<16x128xbf16, #tpu.memory_space<vmem>>, vector<16x32xbf16>
    tpu.vector_store %arg15[%c0_21, %c64], %70 {strides = array<i32>} : memref<16x128xbf16, #tpu.memory_space<vmem>>, vector<16x32xbf16>,
    %72 = vector.extract_strided_slice %10 {offsets = [0, 0, 96], sizes = [2, 8, 32], strides = [1, 1, 1]} : vector<2x8x128xbf16> to vector<2x8x32xbf16>
    %73 = vector.extract_strided_slice %12 {offsets = [0, 0, 96], sizes = [2, 8, 32], strides = [1, 1, 1]} : vector<2x8x128xbf16> to vector<2x8x32xbf16>
    "tpu.trace_start"() <{level = 10 : i32, message = "bqd,bkd->bqk"}> : () -> ()
    %cst_22 = arith.constant dense<0.000000e+00> : vector<2x8x8xf32>
    %74 = tpu.matmul %72, %73, %cst_22 {dimension_numbers = #tpu.dot_dimension_numbers<[2], [2], [1], [1], [0, 0, 0, 1, 1, 1], [0], [0]>} : vector<2x8x32xbf16>, vector<2x8x32xbf16>, vector<2x8x8xf32> -> vector<2x8x8xf32>
    "tpu.trace_stop"() : () -> ()
    %cst_23 = arith.constant dense<0xFF800000> : vector<2x8xf32>
    %75 = vector.multi_reduction <maximumf>, %74, %cst_23 [2] : vector<2x8x8xf32> to vector<2x8xf32>
    %76 = vector.shape_cast %75 : vector<2x8xf32> to vector<2x8x1xf32>
    %77 = vector.broadcast %76 : vector<2x8x1xf32> to vector<2x8x8xf32>
    %78 = arith.subf %74, %77 : vector<2x8x8xf32>
    %79 = math.exp %78 : vector<2x8x8xf32>
    %cst_24 = arith.constant dense<0.000000e+00> : vector<2x8xf32>
    %80 = vector.multi_reduction <add>, %79, %cst_24 [2] : vector<2x8x8xf32> to vector<2x8xf32>
    %81 = vector.shape_cast %80 : vector<2x8xf32> to vector<2x8x1xf32>
    %82 = tpu.reciprocal %81 {approx = true} : vector<2x8x1xf32> -> vector<2x8x1xf32>
    %83 = vector.broadcast %82 : vector<2x8x1xf32> to vector<2x8x8xf32>
    %84 = arith.mulf %79, %83 : vector<2x8x8xf32>
    %85 = arith.truncf %84 : vector<2x8x8xf32> to vector<2x8x8xbf16>
    %86 = vector.extract_strided_slice %14 {offsets = [0, 0, 96], sizes = [2, 8, 32], strides = [1, 1, 1]} : vector<2x8x128xbf16> to vector<2x8x32xbf16>
    "tpu.trace_start"() <{level = 10 : i32, message = "bqk,bkd->bqd"}> : () -> ()
    %cst_25 = arith.constant dense<0.000000e+00> : vector<2x8x32xf32>
    %87 = tpu.matmul %85, %86, %cst_25 {dimension_numbers = #tpu.dot_dimension_numbers<[2], [1], [1], [2], [0, 0, 0, 1, 1, 2], [0], [0]>} : vector<2x8x8xbf16>, vector<2x8x32xbf16>, vector<2x8x32xf32> -> vector<2x8x32xf32>
    "tpu.trace_stop"() : () -> ()
    %88 = vector.shape_cast %87 : vector<2x8x32xf32> to vector<16x32xf32>
    %89 = arith.truncf %88 : vector<16x32xf32> to vector<16x32xbf16>
    %c0_26 = arith.constant 0 : index
    %c96 = arith.constant 96 : index
    %90 = vector.load %arg15[%c0_26, %c96] : memref<16x128xbf16, #tpu.memory_space<vmem>>, vector<16x32xbf16>
    tpu.vector_store %arg15[%c0_26, %c96], %89 {strides = array<i32>} : memref<16x128xbf16, #tpu.memory_space<vmem>>, vector<16x32xbf16>,
    %c0_27 = arith.constant 0 : index
    %c0_28 = arith.constant 0 : index
    %91 = vector.load %arg15[%c0_27, %c0_28] : memref<16x128xbf16, #tpu.memory_space<vmem>>, vector<16x128xbf16>
    %c0_29 = arith.constant 0 : index
    %c0_30 = arith.constant 0 : index
    %92 = vector.load %arg4[%c0_29, %c0_30] : memref<128x128xbf16, #tpu.memory_space<vmem>>, vector<128x128xbf16>
    %cst_31 = arith.constant dense<0.000000e+00> : vector<16x128xf32>
    %93 = tpu.matmul %91, %92, %cst_31 {dimension_numbers = #tpu.dot_dimension_numbers<[1], [0], [0], [1], [0, 0, 1, 1], [], []>} : vector<16x128xbf16>, vector<128x128xbf16>, vector<16x128xf32> -> vector<16x128xf32>
    %c0_32 = arith.constant 0 : index
    %c0_33 = arith.constant 0 : index
    %94 = vector.load %arg5[%c0_32, %c0_33] : memref<1x128xf32, #tpu.memory_space<vmem>>, vector<1x128xf32>
    %95 = vector.broadcast %94 : vector<1x128xf32> to vector<16x128xf32>
    %96 = arith.addf %93, %95 : vector<16x128xf32>
    %97 = arith.addf %1, %96 : vector<16x128xf32>
    %c0_34 = arith.constant 0 : index
    %c0_35 = arith.constant 0 : index
    %98 = vector.load %arg6[%c0_34, %c0_35] : memref<1x128xf32, #tpu.memory_space<vmem>>, vector<1x128xf32>
    %c0_36 = arith.constant 0 : index
    %c0_37 = arith.constant 0 : index
    %99 = vector.load %arg7[%c0_36, %c0_37] : memref<1x128xf32, #tpu.memory_space<vmem>>, vector<1x128xf32>
    %cst_38 = arith.constant dense<0.000000e+00> : vector<16xf32>
    %100 = vector.multi_reduction <add>, %97, %cst_38 [1] : vector<16x128xf32> to vector<16xf32>
    %101 = vector.shape_cast %100 : vector<16xf32> to vector<16x1xf32>
    %cst_39 = arith.constant 1.280000e+02 : f32
    %102 = vector.broadcast %cst_39 : f32 to vector<16x1xf32>
    %103 = arith.divf %101, %102 : vector<16x1xf32>
    %104 = arith.mulf %97, %97 : vector<16x128xf32>
    %cst_40 = arith.constant dense<0.000000e+00> : vector<16xf32>
    %105 = vector.multi_reduction <add>, %104, %cst_40 [1] : vector<16x128xf32> to vector<16xf32>
    %106 = vector.shape_cast %105 : vector<16xf32> to vector<16x1xf32>
    %cst_41 = arith.constant 1.280000e+02 : f32
    %107 = vector.broadcast %cst_41 : f32 to vector<16x1xf32>
    %108 = arith.divf %106, %107 : vector<16x1xf32>
    %109 = arith.mulf %103, %103 : vector<16x1xf32>
    %110 = arith.subf %108, %109 : vector<16x1xf32>
    %cst_42 = arith.constant 0.000000e+00 : f32
    %111 = vector.broadcast %cst_42 : f32 to vector<16x1xf32>
    %112 = arith.maximumf %110, %111 : vector<16x1xf32>
    %113 = vector.broadcast %103 : vector<16x1xf32> to vector<16x128xf32>
    %114 = arith.subf %97, %113 : vector<16x128xf32>
    %cst_43 = arith.constant 9.99999974E-6 : f32
    %115 = vector.broadcast %cst_43 : f32 to vector<16x1xf32>
    %116 = arith.addf %112, %115 : vector<16x1xf32>
    %117 = math.rsqrt %116 : vector<16x1xf32>
    %118 = vector.broadcast %117 : vector<16x1xf32> to vector<16x128xf32>
    %119 = arith.mulf %114, %118 : vector<16x128xf32>
    %120 = vector.broadcast %98 : vector<1x128xf32> to vector<16x128xf32>
    %121 = arith.mulf %119, %120 : vector<16x128xf32>
    %122 = vector.broadcast %99 : vector<1x128xf32> to vector<16x128xf32>
    %123 = arith.addf %121, %122 : vector<16x128xf32>
    %124 = arith.truncf %123 : vector<16x128xf32> to vector<16x128xbf16>
    %cst_44 = arith.constant 0.000000e+00 : f32
    %125 = vector.broadcast %cst_44 : f32 to vector<16x128xf32>
    %c0_45 = arith.constant 0 : index
    %c0_46 = arith.constant 0 : index
    %126 = vector.load %arg8[%c0_45, %c0_46] : memref<128x256xbf16, #tpu.memory_space<vmem>>, vector<128x256xbf16>
    %cst_47 = arith.constant dense<0.000000e+00> : vector<16x256xf32>
    %127 = tpu.matmul %124, %126, %cst_47 {dimension_numbers = #tpu.dot_dimension_numbers<[1], [0], [0], [1], [0, 0, 1, 1], [], []>} : vector<16x128xbf16>, vector<128x256xbf16>, vector<16x256xf32> -> vector<16x256xf32>
    %c0_48 = arith.constant 0 : index
    %c0_49 = arith.constant 0 : index
    %128 = vector.load %arg9[%c0_48, %c0_49] : memref<1x256xf32, #tpu.memory_space<vmem>>, vector<1x256xf32>
    %129 = vector.broadcast %128 : vector<1x256xf32> to vector<16x256xf32>
    %130 = arith.addf %127, %129 : vector<16x256xf32>
    %cst_50 = arith.constant 0.000000e+00 : f32
    %131 = vector.broadcast %cst_50 : f32 to vector<16x256xf32>
    %132 = arith.maximumf %130, %131 : vector<16x256xf32>
    %133 = arith.truncf %132 : vector<16x256xf32> to vector<16x256xbf16>
    %c0_51 = arith.constant 0 : index
    %c0_52 = arith.constant 0 : index
    %134 = vector.load %arg10[%c0_51, %c0_52] : memref<256x128xbf16, #tpu.memory_space<vmem>>, vector<256x128xbf16>
    %cst_53 = arith.constant dense<0.000000e+00> : vector<16x128xf32>
    %135 = tpu.matmul %133, %134, %cst_53 {dimension_numbers = #tpu.dot_dimension_numbers<[1], [0], [0], [1], [0, 0, 1, 1], [], []>} : vector<16x256xbf16>, vector<256x128xbf16>, vector<16x128xf32> -> vector<16x128xf32>
    %136 = arith.addf %125, %135 : vector<16x128xf32>
    %c0_54 = arith.constant 0 : index
    %c0_55 = arith.constant 0 : index
    %137 = vector.load %arg11[%c0_54, %c0_55] : memref<1x128xf32, #tpu.memory_space<vmem>>, vector<1x128xf32>
    %138 = vector.broadcast %137 : vector<1x128xf32> to vector<16x128xf32>
    %139 = arith.addf %136, %138 : vector<16x128xf32>
    %140 = arith.addf %123, %139 : vector<16x128xf32>
    %c0_56 = arith.constant 0 : index
    %c0_57 = arith.constant 0 : index
    %141 = vector.load %arg12[%c0_56, %c0_57] : memref<1x128xf32, #tpu.memory_space<vmem>>, vector<1x128xf32>
    %c0_58 = arith.constant 0 : index
    %c0_59 = arith.constant 0 : index
    %142 = vector.load %arg13[%c0_58, %c0_59] : memref<1x128xf32, #tpu.memory_space<vmem>>, vector<1x128xf32>
    %cst_60 = arith.constant dense<0.000000e+00> : vector<16xf32>
    %143 = vector.multi_reduction <add>, %140, %cst_60 [1] : vector<16x128xf32> to vector<16xf32>
    %144 = vector.shape_cast %143 : vector<16xf32> to vector<16x1xf32>
    %cst_61 = arith.constant 1.280000e+02 : f32
    %145 = vector.broadcast %cst_61 : f32 to vector<16x1xf32>
    %146 = arith.divf %144, %145 : vector<16x1xf32>
    %147 = arith.mulf %140, %140 : vector<16x128xf32>
    %cst_62 = arith.constant dense<0.000000e+00> : vector<16xf32>
    %148 = vector.multi_reduction <add>, %147, %cst_62 [1] : vector<16x128xf32> to vector<16xf32>
    %149 = vector.shape_cast %148 : vector<16xf32> to vector<16x1xf32>
    %cst_63 = arith.constant 1.280000e+02 : f32
    %150 = vector.broadcast %cst_63 : f32 to vector<16x1xf32>
    %151 = arith.divf %149, %150 : vector<16x1xf32>
    %152 = arith.mulf %146, %146 : vector<16x1xf32>
    %153 = arith.subf %151, %152 : vector<16x1xf32>
    %cst_64 = arith.constant 0.000000e+00 : f32
    %154 = vector.broadcast %cst_64 : f32 to vector<16x1xf32>
    %155 = arith.maximumf %153, %154 : vector<16x1xf32>
    %156 = vector.broadcast %146 : vector<16x1xf32> to vector<16x128xf32>
    %157 = arith.subf %140, %156 : vector<16x128xf32>
    %cst_65 = arith.constant 9.99999974E-6 : f32
    %158 = vector.broadcast %cst_65 : f32 to vector<16x1xf32>
    %159 = arith.addf %155, %158 : vector<16x1xf32>
    %160 = math.rsqrt %159 : vector<16x1xf32>
    %161 = vector.broadcast %160 : vector<16x1xf32> to vector<16x128xf32>
    %162 = arith.mulf %157, %161 : vector<16x128xf32>
    %163 = vector.broadcast %141 : vector<1x128xf32> to vector<16x128xf32>
    %164 = arith.mulf %162, %163 : vector<16x128xf32>
    %165 = vector.broadcast %142 : vector<1x128xf32> to vector<16x128xf32>
    %166 = arith.addf %164, %165 : vector<16x128xf32>
    %167 = vector.shape_cast %166 : vector<16x128xf32> to vector<2x8x128xf32>
    %c0_66 = arith.constant 0 : index
    %c0_67 = arith.constant 0 : index
    %c0_68 = arith.constant 0 : index
    %168 = vector.load %arg14[%c0_66, %c0_67, %c0_68] : memref<2x8x128xf32, #tpu.memory_space<vmem>>, vector<2x8x128xf32>
    tpu.vector_store %arg14[%c0_66, %c0_67, %c0_68], %167 {strides = array<i32>} : memref<2x8x128xf32, #tpu.memory_space<vmem>>, vector<2x8x128xf32>,
    return
  }
  func.func @transform_0(%arg0: i32) -> (i32, i32, i32) {
    %c0_i32 = arith.constant 0 : i32
    %c0_i32_0 = arith.constant 0 : i32
    %c0_i32_1 = arith.constant 0 : i32
    return %arg0, %c0_i32, %c0_i32_0 : i32, i32, i32
  }
  func.func @transform_1(%arg0: i32) -> (i32, i32) {
    %c0_i32 = arith.constant 0 : i32
    %c0_i32_0 = arith.constant 0 : i32
    %c0_i32_1 = arith.constant 0 : i32
    return %c0_i32, %c0_i32_0 : i32, i32
  }
  func.func @transform_2(%arg0: i32) -> (i32, i32) {
    %c0_i32 = arith.constant 0 : i32
    %c0_i32_0 = arith.constant 0 : i32
    %c0_i32_1 = arith.constant 0 : i32
    return %c0_i32, %c0_i32_0 : i32, i32
  }
  func.func @transform_3(%arg0: i32) -> (i32, i32) {
    %c0_i32 = arith.constant 0 : i32
    %c0_i32_0 = arith.constant 0 : i32
    %c0_i32_1 = arith.constant 0 : i32
    return %c0_i32, %c0_i32_0 : i32, i32
  }
  func.func @transform_4(%arg0: i32) -> (i32, i32) {
    %c0_i32 = arith.constant 0 : i32
    %c0_i32_0 = arith.constant 0 : i32
    %c0_i32_1 = arith.constant 0 : i32
    return %c0_i32, %c0_i32_0 : i32, i32
  }
  func.func @transform_5(%arg0: i32) -> (i32, i32) {
    %c0_i32 = arith.constant 0 : i32
    %c0_i32_0 = arith.constant 0 : i32
    %c0_i32_1 = arith.constant 0 : i32
    return %c0_i32, %c0_i32_0 : i32, i32
  }
  func.func @transform_6(%arg0: i32) -> (i32, i32) {
    %c0_i32 = arith.constant 0 : i32
    %c0_i32_0 = arith.constant 0 : i32
    %c0_i32_1 = arith.constant 0 : i32
    return %c0_i32, %c0_i32_0 : i32, i32
  }
  func.func @transform_7(%arg0: i32) -> (i32, i32) {
    %c0_i32 = arith.constant 0 : i32
    %c0_i32_0 = arith.constant 0 : i32
    %c0_i32_1 = arith.constant 0 : i32
    return %c0_i32, %c0_i32_0 : i32, i32
  }
  func.func @transform_8(%arg0: i32) -> (i32, i32) {
    %c0_i32 = arith.constant 0 : i32
    %c0_i32_0 = arith.constant 0 : i32
    %c0_i32_1 = arith.constant 0 : i32
    return %c0_i32, %c0_i32_0 : i32, i32
  }
  func.func @transform_9(%arg0: i32) -> (i32, i32) {
    %c0_i32 = arith.constant 0 : i32
    %c0_i32_0 = arith.constant 0 : i32
    %c0_i32_1 = arith.constant 0 : i32
    return %c0_i32, %c0_i32_0 : i32, i32
  }
  func.func @transform_10(%arg0: i32) -> (i32, i32) {
    %c0_i32 = arith.constant 0 : i32
    %c0_i32_0 = arith.constant 0 : i32
    %c0_i32_1 = arith.constant 0 : i32
    return %c0_i32, %c0_i32_0 : i32, i32
  }
  func.func @transform_11(%arg0: i32) -> (i32, i32) {
    %c0_i32 = arith.constant 0 : i32
    %c0_i32_0 = arith.constant 0 : i32
    %c0_i32_1 = arith.constant 0 : i32
    return %c0_i32, %c0_i32_0 : i32, i32
  }
  func.func @transform_12(%arg0: i32) -> (i32, i32) {
    %c0_i32 = arith.constant 0 : i32
    %c0_i32_0 = arith.constant 0 : i32
    %c0_i32_1 = arith.constant 0 : i32
    return %c0_i32, %c0_i32_0 : i32, i32
  }
  func.func @transform_13(%arg0: i32) -> (i32, i32, i32) {
    %c0_i32 = arith.constant 0 : i32
    %c0_i32_0 = arith.constant 0 : i32
    %c0_i32_1 = arith.constant 0 : i32
    return %arg0, %c0_i32, %c0_i32_0 : i32, i32, i32
  }
}

</mosaic_0001>

<llo_original>
// kernel: tpu_custom_call.1
$region0: #{tpu_custom_call.1}
  #allocation0 [shape = 'u32[]', space=smem, size = 0x4, offset = 0x4, fixed_abs, tag = 'smem constant byte address 0x4 - core index']
  #allocation1 [shape = 'u32[144,128]{1,0:T(1,128)}', space=vmem, size = 0x12000, scoped, tag = 'internal scratch']
  #allocation2 [shape = 'bf16[16,128]{1,0:T(8,128)(2,1)}', space=vmem, size = 0x1000, scoped, tag = 'scratch operand']
  %s0 = inlined_call_operand.hbm [shape: f32[4,8,128], index: 0, kind: input, shape index: {}]
  %s1 = inlined_call_operand.hbm [shape: bf16[128,384], index: 1, kind: input, shape index: {}]
  %s2 = inlined_call_operand.vmem [shape: f32[1,384], index: 2, kind: input, shape index: {}]
  %s3 = inlined_call_operand.hbm [shape: bf16[128,128], index: 3, kind: input, shape index: {}]
  %s4 = inlined_call_operand.vmem [shape: f32[1,128], index: 4, kind: input, shape index: {}]
  %s5 = inlined_call_operand.vmem [shape: f32[1,128], index: 5, kind: input, shape index: {}]
  %s6 = inlined_call_operand.vmem [shape: f32[1,128], index: 6, kind: input, shape index: {}]
  %s7 = inlined_call_operand.hbm [shape: bf16[128,256], index: 7, kind: input, shape index: {}]
  %s8 = inlined_call_operand.vmem [shape: f32[1,256], index: 8, kind: input, shape index: {}]
  %s9 = inlined_call_operand.hbm [shape: bf16[256,128], index: 9, kind: input, shape index: {}]
  %s10 = inlined_call_operand.vmem [shape: f32[1,128], index: 10, kind: input, shape index: {}]
  %s11 = inlined_call_operand.vmem [shape: f32[1,128], index: 11, kind: input, shape index: {}]
  %s12 = inlined_call_operand.vmem [shape: f32[1,128], index: 12, kind: input, shape index: {}]
  %s13 = inlined_call_operand.hbm [shape: f32[4,8,128], index: 13, kind: output, shape index: {}]
  %s14 = sld [smem:[#allocation0]]
  $region105: #{tpu_custom_call.1} parent=0
    _
  %s16 = ssub.s32 1, %s14
  %s17 = scalar_select 0, %s16, %s14
  $region1: #{tpu_custom_call.1} parent=0
    #allocation3 [shape = 'u8[16384]{0}', space=vmem, size = 0x4000, scoped, tag = 'input window, operand 0']
    #allocation4 [shape = 's32[2]{0}', space=sflag, size = 0x8, scoped, tag = 'scoped memory for tpu_custom_call.1']
    #allocation5 [shape = 's32[2]{0}', space=sflag, size = 0x8, scoped, tag = 'scoped memory for tpu_custom_call.1']
    #allocation6 [shape = 'u8[98304]{0}', space=vmem, size = 0x18000, scoped, tag = 'input window, operand 1, single buffered']
    #allocation7 [shape = 's32[1]{0}', space=sflag, size = 0x4, scoped, tag = 'scoped memory for tpu_custom_call.1']
    #allocation8 [shape = 'u8[32768]{0}', space=vmem, size = 0x8000, scoped, tag = 'input window, operand 3, single buffered']
    #allocation9 [shape = 'u8[65536]{0}', space=vmem, size = 0x10000, scoped, tag = 'input window, operand 7, single buffered']
    #allocation10 [shape = 's32[1]{0}', space=sflag, size = 0x4, scoped, tag = 'scoped memory for tpu_custom_call.1']
    #allocation11 [shape = 'u8[65536]{0}', space=vmem, size = 0x10000, scoped, tag = 'input window, operand 9, single buffered']
    #allocation12 [shape = 'u8[16384]{0}', space=vmem, size = 0x4000, scoped, tag = 'output window, operand 0']
    %18 = vsyncpa [#allocation4], 0
    %s19 = scalar_lea.sflag [#allocation4], 1
    %20 = vsyncpa %s19, 0
    %21 = vsyncpa [#allocation7], 0
    %22 = vsyncpa [#allocation10], 0
    %23 = vsyncpa [#allocation5], 0
    %s24 = scalar_lea.sflag [#allocation5], 1
    %25 = vsyncpa %s24, 0
    loop: start=0, step=1, limit=4
    $region2: #{tpu_custom_call.1} parent=1 // loop_pre_header
      _
    $region3: #{tpu_custom_call.1} parent=1 // loop_header
      %s27 = sphi 0, %s31
      %p28 = scmp.ge.s32.totalorder %s27, 4
      %s37 = sphi 0, %s39
      %s40 = sphi 0, %s37
      %s41 = sphi 0, %s40
      %s57 = sphi 0, %s41
      %s61 = sphi 0, %s61
      %s63 = sphi 0, %s61
      %s64 = sphi 0, %s63
      %s78 = sphi 0, %s64
      %s82 = sphi 0, %s82
      %s84 = sphi 0, %s82
      %s85 = sphi 0, %s84
      %s99 = sphi 0, %s85
      %s103 = sphi 0, %s103
      %s105 = sphi 0, %s103
      %s106 = sphi 0, %s105
      %s120 = sphi 0, %s106
      %s124 = sphi 0, %s124
      %s126 = sphi 0, %s124
      %s127 = sphi 0, %s126
      %s141 = sphi 0, %s127
      %s145 = sphi 0, %s145
      %s147 = sphi 0, %s145
      %s148 = sphi 0, %s147
      %s162 = sphi 0, %s148
      %s166 = sphi 0, %s166
      %s168 = sphi 0, %s166
      %s169 = sphi 0, %s168
      %s183 = sphi 0, %s169
      %s187 = sphi 0, %s187
      %s189 = sphi 0, %s187
      %s190 = sphi 0, %s189
      %s204 = sphi 0, %s190
      %s208 = sphi 0, %s208
      %s210 = sphi 0, %s208
      %s211 = sphi 0, %s210
      %s225 = sphi 0, %s211
      %s229 = sphi 0, %s229
      %s231 = sphi 0, %s229
      %s232 = sphi 0, %s231
      %s246 = sphi 0, %s232
      %s250 = sphi 0, %s250
      %s252 = sphi 0, %s250
      %s253 = sphi 0, %s252
      %s267 = sphi 0, %s253
      %s271 = sphi 0, %s271
      %s273 = sphi 0, %s271
      %s274 = sphi 0, %s273
      %s288 = sphi 0, %s274
      %s292 = sphi 0, %s292
      %s294 = sphi 0, %s292
      %s295 = sphi 0, %s294
      %s309 = sphi 0, %s295
      %s315 = sphi 0, %s317
      %s318 = sphi 0, %s315
      %s319 = sphi 0, %s318
      %s335 = sphi 0, %s319
    $region4: #{tpu_custom_call.1} parent=1 // loop_header_branch
      %30 = sbr.rel (%p28) target = $region8
    $region5: #{tpu_custom_call.1} parent=1 // loop_body
      %s32 = ssub.s32 %s27, 1
      %s33 = ssub.s32 %s27, 2
      %s34 = sadd.s32 %s27, 1
      %s35 = ssub.s32 %s27, %s34
      %p36 = scmp.eq.s32.totalorder %s35, 0
      %s38 = sadd.s32 %s37, 1
      %s39 = scalar_select %p36, %s37, %s38
      %p42 = pneg %p36
      %p43 = scmp.eq.s32.totalorder %s27, 1
      %p44 = por %p42, %p43
      %p45 = scmp.ne.s32.totalorder %s37, %s40
      %p46 = scmp.eq.s32.totalorder %s27, 0
      %p47 = por %p45, %p46
      %p48 = scmp.ne.s32.totalorder %s37, %s40
      %p49 = scmp.eq.s32.totalorder %s32, 1
      %p50 = por %p48, %p49
      %p51 = scmp.ne.s32.totalorder %s40, %s41
      %p52 = scmp.eq.s32.totalorder %s32, 0
      %p53 = por %p51, %p52
      %p54 = scmp.ne.s32.totalorder %s40, %s41
      %p55 = scmp.eq.s32.totalorder %s33, 1
      %p56 = por %p54, %p55
      %p58 = scmp.ne.s32.totalorder %s41, %s57
      %p59 = scmp.eq.s32.totalorder %s33, 0
      %p60 = por %p58, %p59
      %s62 = sadd.s32 %s61, 1
      %p65 = scmp.eq.s32.totalorder %s27, 1
      %p66 = scmp.ne.s32.totalorder %s61, %s63
      %p67 = scmp.eq.s32.totalorder %s27, 0
      %p68 = por %p66, %p67
      %p69 = scmp.ne.s32.totalorder %s61, %s63
      %p70 = scmp.eq.s32.totalorder %s32, 1
      %p71 = por %p69, %p70
      %p72 = scmp.ne.s32.totalorder %s63, %s64
      %p73 = scmp.eq.s32.totalorder %s32, 0
      %p74 = por %p72, %p73
      %p75 = scmp.ne.s32.totalorder %s63, %s64
      %p76 = scmp.eq.s32.totalorder %s33, 1
      %p77 = por %p75, %p76
      %p79 = scmp.ne.s32.totalorder %s64, %s78
      %p80 = scmp.eq.s32.totalorder %s33, 0
      %p81 = por %p79, %p80
      %s83 = sadd.s32 %s82, 1
      %p86 = scmp.eq.s32.totalorder %s27, 1
      %p87 = scmp.ne.s32.totalorder %s82, %s84
      %p88 = scmp.eq.s32.totalorder %s27, 0
      %p89 = por %p87, %p88
      %p90 = scmp.ne.s32.totalorder %s82, %s84
      %p91 = scmp.eq.s32.totalorder %s32, 1
      %p92 = por %p90, %p91
      %p93 = scmp.ne.s32.totalorder %s84, %s85
      %p94 = scmp.eq.s32.totalorder %s32, 0
      %p95 = por %p93, %p94
      %p96 = scmp.ne.s32.totalorder %s84, %s85
      %p97 = scmp.eq.s32.totalorder %s33, 1
      %p98 = por %p96, %p97
      %p100 = scmp.ne.s32.totalorder %s85, %s99
      %p101 = scmp.eq.s32.totalorder %s33, 0
      %p102 = por %p100, %p101
      %s104 = sadd.s32 %s103, 1
      %p107 = scmp.eq.s32.totalorder %s27, 1
      %p108 = scmp.ne.s32.totalorder %s103, %s105
      %p109 = scmp.eq.s32.totalorder %s27, 0
      %p110 = por %p108, %p109
      %p111 = scmp.ne.s32.totalorder %s103, %s105
      %p112 = scmp.eq.s32.totalorder %s32, 1
      %p113 = por %p111, %p112
      %p114 = scmp.ne.s32.totalorder %s105, %s106
      %p115 = scmp.eq.s32.totalorder %s32, 0
      %p116 = por %p114, %p115
      %p117 = scmp.ne.s32.totalorder %s105, %s106
      %p118 = scmp.eq.s32.totalorder %s33, 1
      %p119 = por %p117, %p118
      %p121 = scmp.ne.s32.totalorder %s106, %s120
      %p122 = scmp.eq.s32.totalorder %s33, 0
      %p123 = por %p121, %p122
      %s125 = sadd.s32 %s124, 1
      %p128 = scmp.eq.s32.totalorder %s27, 1
      %p129 = scmp.ne.s32.totalorder %s124, %s126
      %p130 = scmp.eq.s32.totalorder %s27, 0
      %p131 = por %p129, %p130
      %p132 = scmp.ne.s32.totalorder %s124, %s126
      %p133 = scmp.eq.s32.totalorder %s32, 1
      %p134 = por %p132, %p133
      %p135 = scmp.ne.s32.totalorder %s126, %s127
      %p136 = scmp.eq.s32.totalorder %s32, 0
      %p137 = por %p135, %p136
      %p138 = scmp.ne.s32.totalorder %s126, %s127
      %p139 = scmp.eq.s32.totalorder %s33, 1
      %p140 = por %p138, %p139
      %p142 = scmp.ne.s32.totalorder %s127, %s141
      %p143 = scmp.eq.s32.totalorder %s33, 0
      %p144 = por %p142, %p143
      %s146 = sadd.s32 %s145, 1
      %p149 = scmp.eq.s32.totalorder %s27, 1
      %p150 = scmp.ne.s32.totalorder %s145, %s147
      %p151 = scmp.eq.s32.totalorder %s27, 0
      %p152 = por %p150, %p151
      %p153 = scmp.ne.s32.totalorder %s145, %s147
      %p154 = scmp.eq.s32.totalorder %s32, 1
      %p155 = por %p153, %p154
      %p156 = scmp.ne.s32.totalorder %s147, %s148
      %p157 = scmp.eq.s32.totalorder %s32, 0
      %p158 = por %p156, %p157
      %p159 = scmp.ne.s32.totalorder %s147, %s148
      %p160 = scmp.eq.s32.totalorder %s33, 1
      %p161 = por %p159, %p160
      %p163 = scmp.ne.s32.totalorder %s148, %s162
      %p164 = scmp.eq.s32.totalorder %s33, 0
      %p165 = por %p163, %p164
      %s167 = sadd.s32 %s166, 1
      %p170 = scmp.eq.s32.totalorder %s27, 1
      %p171 = scmp.ne.s32.totalorder %s166, %s168
      %p172 = scmp.eq.s32.totalorder %s27, 0
      %p173 = por %p171, %p172
      %p174 = scmp.ne.s32.totalorder %s166, %s168
      %p175 = scmp.eq.s32.totalorder %s32, 1
      %p176 = por %p174, %p175
      %p177 = scmp.ne.s32.totalorder %s168, %s169
      %p178 = scmp.eq.s32.totalorder %s32, 0
      %p179 = por %p177, %p178
      %p180 = scmp.ne.s32.totalorder %s168, %s169
      %p181 = scmp.eq.s32.totalorder %s33, 1
      %p182 = por %p180, %p181
      %p184 = scmp.ne.s32.totalorder %s169, %s183
      %p185 = scmp.eq.s32.totalorder %s33, 0
      %p186 = por %p184, %p185
      %s188 = sadd.s32 %s187, 1
      %p191 = scmp.eq.s32.totalorder %s27, 1
      %p192 = scmp.ne.s32.totalorder %s187, %s189
      %p193 = scmp.eq.s32.totalorder %s27, 0
      %p194 = por %p192, %p193
      %p195 = scmp.ne.s32.totalorder %s187, %s189
      %p196 = scmp.eq.s32.totalorder %s32, 1
      %p197 = por %p195, %p196
      %p198 = scmp.ne.s32.totalorder %s189, %s190
      %p199 = scmp.eq.s32.totalorder %s32, 0
      %p200 = por %p198, %p199
      %p201 = scmp.ne.s32.totalorder %s189, %s190
      %p202 = scmp.eq.s32.totalorder %s33, 1
      %p203 = por %p201, %p202
      %p205 = scmp.ne.s32.totalorder %s190, %s204
      %p206 = scmp.eq.s32.totalorder %s33, 0
      %p207 = por %p205, %p206
      %s209 = sadd.s32 %s208, 1
      %p212 = scmp.eq.s32.totalorder %s27, 1
      %p213 = scmp.ne.s32.totalorder %s208, %s210
      %p214 = scmp.eq.s32.totalorder %s27, 0
      %p215 = por %p213, %p214
      %p216 = scmp.ne.s32.totalorder %s208, %s210
      %p217 = scmp.eq.s32.totalorder %s32, 1
      %p218 = por %p216, %p217
      %p219 = scmp.ne.s32.totalorder %s210, %s211
      %p220 = scmp.eq.s32.totalorder %s32, 0
      %p221 = por %p219, %p220
      %p222 = scmp.ne.s32.totalorder %s210, %s211
      %p223 = scmp.eq.s32.totalorder %s33, 1
      %p224 = por %p222, %p223
      %p226 = scmp.ne.s32.totalorder %s211, %s225
      %p227 = scmp.eq.s32.totalorder %s33, 0
      %p228 = por %p226, %p227
      %s230 = sadd.s32 %s229, 1
      %p233 = scmp.eq.s32.totalorder %s27, 1
      %p234 = scmp.ne.s32.totalorder %s229, %s231
      %p235 = scmp.eq.s32.totalorder %s27, 0
      %p236 = por %p234, %p235
      %p237 = scmp.ne.s32.totalorder %s229, %s231
      %p238 = scmp.eq.s32.totalorder %s32, 1
      %p239 = por %p237, %p238
      %p240 = scmp.ne.s32.totalorder %s231, %s232
      %p241 = scmp.eq.s32.totalorder %s32, 0
      %p242 = por %p240, %p241
      %p243 = scmp.ne.s32.totalorder %s231, %s232
      %p244 = scmp.eq.s32.totalorder %s33, 1
      %p245 = por %p243, %p244
      %p247 = scmp.ne.s32.totalorder %s232, %s246
      %p248 = scmp.eq.s32.totalorder %s33, 0
      %p249 = por %p247, %p248
      %s251 = sadd.s32 %s250, 1
      %p254 = scmp.eq.s32.totalorder %s27, 1
      %p255 = scmp.ne.s32.totalorder %s250, %s252
      %p256 = scmp.eq.s32.totalorder %s27, 0
      %p257 = por %p255, %p256
      %p258 = scmp.ne.s32.totalorder %s250, %s252
      %p259 = scmp.eq.s32.totalorder %s32, 1
      %p260 = por %p258, %p259
      %p261 = scmp.ne.s32.totalorder %s252, %s253
      %p262 = scmp.eq.s32.totalorder %s32, 0
      %p263 = por %p261, %p262
      %p264 = scmp.ne.s32.totalorder %s252, %s253
      %p265 = scmp.eq.s32.totalorder %s33, 1
      %p266 = por %p264, %p265
      %p268 = scmp.ne.s32.totalorder %s253, %s267
      %p269 = scmp.eq.s32.totalorder %s33, 0
      %p270 = por %p268, %p269
      %s272 = sadd.s32 %s271, 1
      %p275 = scmp.eq.s32.totalorder %s27, 1
      %p276 = scmp.ne.s32.totalorder %s271, %s273
      %p277 = scmp.eq.s32.totalorder %s27, 0
      %p278 = por %p276, %p277
      %p279 = scmp.ne.s32.totalorder %s271, %s273
      %p280 = scmp.eq.s32.totalorder %s32, 1
      %p281 = por %p279, %p280
      %p282 = scmp.ne.s32.totalorder %s273, %s274
      %p283 = scmp.eq.s32.totalorder %s32, 0
      %p284 = por %p282, %p283
      %p285 = scmp.ne.s32.totalorder %s273, %s274
      %p286 = scmp.eq.s32.totalorder %s33, 1
      %p287 = por %p285, %p286
      %p289 = scmp.ne.s32.totalorder %s274, %s288
      %p290 = scmp.eq.s32.totalorder %s33, 0
      %p291 = por %p289, %p290
      %s293 = sadd.s32 %s292, 1
      %p296 = scmp.eq.s32.totalorder %s27, 1
      %p297 = scmp.ne.s32.totalorder %s292, %s294
      %p298 = scmp.eq.s32.totalorder %s27, 0
      %p299 = por %p297, %p298
      %p300 = scmp.ne.s32.totalorder %s292, %s294
      %p301 = scmp.eq.s32.totalorder %s32, 1
      %p302 = por %p300, %p301
      %p303 = scmp.ne.s32.totalorder %s294, %s295
      %p304 = scmp.eq.s32.totalorder %s32, 0
      %p305 = por %p303, %p304
      %p306 = scmp.ne.s32.totalorder %s294, %s295
      %p307 = scmp.eq.s32.totalorder %s33, 1
      %p308 = por %p306, %p307
      %p310 = scmp.ne.s32.totalorder %s295, %s309
      %p311 = scmp.eq.s32.totalorder %s33, 0
      %p312 = por %p310, %p311
      %s313 = ssub.s32 %s27, %s34
      %p314 = scmp.eq.s32.totalorder %s313, 0
      %s316 = sadd.s32 %s315, 1
      %s317 = scalar_select %p314, %s315, %s316
      %p320 = pneg %p314
      %p321 = scmp.eq.s32.totalorder %s27, 1
      %p322 = por %p320, %p321
      %p323 = scmp.ne.s32.totalorder %s315, %s318
      %p324 = scmp.eq.s32.totalorder %s27, 0
      %p325 = por %p323, %p324
      %p326 = scmp.ne.s32.totalorder %s315, %s318
      %p327 = scmp.eq.s32.totalorder %s32, 1
      %p328 = por %p326, %p327
      %p329 = scmp.ne.s32.totalorder %s318, %s319
      %p330 = scmp.eq.s32.totalorder %s32, 0
      %p331 = por %p329, %p330
      %p332 = scmp.ne.s32.totalorder %s318, %s319
      %p333 = scmp.eq.s32.totalorder %s33, 1
      %p334 = por %p332, %p333
      %p336 = scmp.ne.s32.totalorder %s319, %s335
      %p337 = scmp.eq.s32.totalorder %s33, 0
      %p338 = por %p336, %p337
      %p339 = scmp.le.s32.totalorder 1, %s27
      %p340 = scmp.lt.s32.totalorder %s27, 3
      %p341 = pnand %p339, %p340
      %p342 = pneg %p341
      // Predicated region
      $region9: #{tpu_custom_call.1} parent=5 // pred_check
        _
      $region10: #{tpu_custom_call.1} parent=5 // pred_check_branch
        %344 = sbr.rel (%p341) target = $region12
      $region11: #{tpu_custom_call.1} parent=5 // pred_region
        %s345 = ssub.s32 %s27, 1
        // Predicated region
        $region13: #{tpu_custom_call.1} parent=11 // pred_check
          %p346 = pneg %p74
        $region14: #{tpu_custom_call.1} parent=11 // pred_check_branch
          %348 = sbr.rel (%p346) target = $region16
        $region15: #{tpu_custom_call.1} parent=11 // pred_region
          %s350 = ssub.s32 3072, 3072
          %351 = vsyncadd [#allocation7], %s350
          %s352 = sshll.u32 [#allocation6], 4
          %s353 = int_to_ptr.vmem [resolvable:$true] %s352
          %358 = dma.hbm_to_vmem [thread:$0]  %s1, 3072, %s353, [#allocation7], 192, 192, 12
        $region16: #{tpu_custom_call.1} parent=11 // pred_fallthru
          _
        // Predicated region
        $region17: #{tpu_custom_call.1} parent=11 // pred_check
          %p359 = pneg %p95
        $region18: #{tpu_custom_call.1} parent=11 // pred_check_branch
          %361 = sbr.rel (%p359) target = $region20
        $region19: #{tpu_custom_call.1} parent=11 // pred_region
          _
        $region20: #{tpu_custom_call.1} parent=11 // pred_fallthru
          _
        // Predicated region
        $region21: #{tpu_custom_call.1} parent=11 // pred_check
          %p362 = pneg %p116
        $region22: #{tpu_custom_call.1} parent=11 // pred_check_branch
          %364 = sbr.rel (%p362) target = $region24
        $region23: #{tpu_custom_call.1} parent=11 // pred_region
          %s366 = ssub.s32 1024, 1024
          %367 = vsyncadd [#allocation7], %s366
          %s368 = sshll.u32 [#allocation8], 4
          %s369 = int_to_ptr.vmem [resolvable:$true] %s368
          %374 = dma.hbm_to_vmem [thread:$0]  %s3, 1024, %s369, [#allocation7], 64, 64, 4
        $region24: #{tpu_custom_call.1} parent=11 // pred_fallthru
          _
        // Predicated region
        $region25: #{tpu_custom_call.1} parent=11 // pred_check
          %p375 = pneg %p137
        $region26: #{tpu_custom_call.1} parent=11 // pred_check_branch
          %377 = sbr.rel (%p375) target = $region28
        $region27: #{tpu_custom_call.1} parent=11 // pred_region
          _
        $region28: #{tpu_custom_call.1} parent=11 // pred_fallthru
          _
        // Predicated region
        $region29: #{tpu_custom_call.1} parent=11 // pred_check
          %p378 = pneg %p158
        $region30: #{tpu_custom_call.1} parent=11 // pred_check_branch
          %380 = sbr.rel (%p378) target = $region32
        $region31: #{tpu_custom_call.1} parent=11 // pred_region
          _
        $region32: #{tpu_custom_call.1} parent=11 // pred_fallthru
          _
        // Predicated region
        $region33: #{tpu_custom_call.1} parent=11 // pred_check
          %p381 = pneg %p179
        $region34: #{tpu_custom_call.1} parent=11 // pred_check_branch
          %383 = sbr.rel (%p381) target = $region36
        $region35: #{tpu_custom_call.1} parent=11 // pred_region
          _
        $region36: #{tpu_custom_call.1} parent=11 // pred_fallthru
          _
        // Predicated region
        $region37: #{tpu_custom_call.1} parent=11 // pred_check
          %p384 = pneg %p200
        $region38: #{tpu_custom_call.1} parent=11 // pred_check_branch
          %386 = sbr.rel (%p384) target = $region40
        $region39: #{tpu_custom_call.1} parent=11 // pred_region
          %s388 = ssub.s32 2048, 2048
          %389 = vsyncadd [#allocation10], %s388
          %s390 = sshll.u32 [#allocation9], 4
          %s391 = int_to_ptr.vmem [resolvable:$true] %s390
          %396 = dma.hbm_to_vmem [thread:$0]  %s7, 2048, %s391, [#allocation10], 128, 128, 8
        $region40: #{tpu_custom_call.1} parent=11 // pred_fallthru
          _
        // Predicated region
        $region41: #{tpu_custom_call.1} parent=11 // pred_check
          %p397 = pneg %p221
        $region42: #{tpu_custom_call.1} parent=11 // pred_check_branch
          %399 = sbr.rel (%p397) target = $region44
        $region43: #{tpu_custom_call.1} parent=11 // pred_region
          _
        $region44: #{tpu_custom_call.1} parent=11 // pred_fallthru
          _
        // Predicated region
        $region45: #{tpu_custom_call.1} parent=11 // pred_check
          %p400 = pneg %p242
        $region46: #{tpu_custom_call.1} parent=11 // pred_check_branch
          %402 = sbr.rel (%p400) target = $region48
        $region47: #{tpu_custom_call.1} parent=11 // pred_region
          %s404 = ssub.s32 2048, 2048
          %405 = vsyncadd [#allocation10], %s404
          %s406 = sshll.u32 [#allocation11], 4
          %s407 = int_to_ptr.vmem [resolvable:$true] %s406
          %412 = dma.hbm_to_vmem [thread:$0]  %s9, 2048, %s407, [#allocation10], 64, 64, 4
        $region48: #{tpu_custom_call.1} parent=11 // pred_fallthru
          _
        // Predicated region
        $region49: #{tpu_custom_call.1} parent=11 // pred_check
          %p413 = pneg %p263
        $region50: #{tpu_custom_call.1} parent=11 // pred_check_branch
          %415 = sbr.rel (%p413) target = $region52
        $region51: #{tpu_custom_call.1} parent=11 // pred_region
          _
        $region52: #{tpu_custom_call.1} parent=11 // pred_fallthru
          _
        // Predicated region
        $region53: #{tpu_custom_call.1} parent=11 // pred_check
          %p416 = pneg %p284
        $region54: #{tpu_custom_call.1} parent=11 // pred_check_branch
          %418 = sbr.rel (%p416) target = $region56
        $region55: #{tpu_custom_call.1} parent=11 // pred_region
          _
        $region56: #{tpu_custom_call.1} parent=11 // pred_fallthru
          _
        // Predicated region
        $region57: #{tpu_custom_call.1} parent=11 // pred_check
          %p419 = pneg %p305
        $region58: #{tpu_custom_call.1} parent=11 // pred_check_branch
          %421 = sbr.rel (%p419) target = $region60
        $region59: #{tpu_custom_call.1} parent=11 // pred_region
          _
        $region60: #{tpu_custom_call.1} parent=11 // pred_fallthru
          _
      $region12: #{tpu_custom_call.1} parent=5 // pred_fallthru
        _
      %p422 = scmp.lt.s32.totalorder %s27, 2
      // Predicated region
      $region61: #{tpu_custom_call.1} parent=5 // pred_check
        %p423 = pneg %p422
      $region62: #{tpu_custom_call.1} parent=5 // pred_check_branch
        %425 = sbr.rel (%p423) target = $region64
      $region63: #{tpu_custom_call.1} parent=5 // pred_region
        // Predicated region
        $region65: #{tpu_custom_call.1} parent=63 // pred_check
          %p426 = pneg %p47
        $region66: #{tpu_custom_call.1} parent=63 // pred_check_branch
          %428 = sbr.rel (%p426) target = $region68
        $region67: #{tpu_custom_call.1} parent=63 // pred_region
          %s429 = sand.u32 %s37, 1
          %s430 = scalar_lea.sflag [#allocation4], %s429
          %s431 = sand.u32 %s37, 1
          %s432 = smul.addr %s431, 16
          %s433 = scalar_lea.vmem [#allocation3], %s432
          %s434 = smul.u32 2, %s27
          %s436 = ssub.s32 256, 256
          %437 = vsyncadd %s430, %s436
          %s438 = smul.addr %s434, 128
          %s439 = scalar_lea.hbm %s0, %s438
          %s440 = sshll.u32 %s433, 4
          %s441 = int_to_ptr.vmem [resolvable:$true] %s440
          %446 = dma.hbm_to_vmem [thread:$0]  %s439, 256, %s441, %s430, 128, 128, 8
        $region68: #{tpu_custom_call.1} parent=63 // pred_fallthru
          _
      $region64: #{tpu_custom_call.1} parent=5 // pred_fallthru
        _
      %p447 = scmp.le.s32.totalorder 1, %s27
      %p448 = scmp.lt.s32.totalorder %s27, 3
      %p449 = pnand %p447, %p448
      %p450 = pneg %p449
      // Predicated region
      $region69: #{tpu_custom_call.1} parent=5 // pred_check
        _
      $region70: #{tpu_custom_call.1} parent=5 // pred_check_branch
        %452 = sbr.rel (%p449) target = $region72
      $region71: #{tpu_custom_call.1} parent=5 // pred_region
        %s453 = ssub.s32 %s27, 1
        %s454 = sand.u32 %s40, 1
        %s455 = scalar_lea.sflag [#allocation4], %s454
        %s456 = sand.u32 %s40, 1
        %s457 = smul.addr %s456, 16
        %s458 = scalar_lea.vmem [#allocation3], %s457
        // Predicated region
        $region73: #{tpu_custom_call.1} parent=71 // pred_check
          %p459 = pneg %p53
        $region74: #{tpu_custom_call.1} parent=71 // pred_check_branch
          %461 = sbr.rel (%p459) target = $region76
        $region75: #{tpu_custom_call.1} parent=71 // pred_region
          %462 = dma.done %s455, 256
        $region76: #{tpu_custom_call.1} parent=71 // pred_fallthru
          _
        // Predicated region
        $region77: #{tpu_custom_call.1} parent=71 // pred_check
          %p463 = pneg %p74
        $region78: #{tpu_custom_call.1} parent=71 // pred_check_branch
          %465 = sbr.rel (%p463) target = $region80
        $region79: #{tpu_custom_call.1} parent=71 // pred_region
          %466 = dma.done [#allocation7], 3072
        $region80: #{tpu_custom_call.1} parent=71 // pred_fallthru
          _
        // Predicated region
        $region81: #{tpu_custom_call.1} parent=71 // pred_check
          %p467 = pneg %p116
        $region82: #{tpu_custom_call.1} parent=71 // pred_check_branch
          %469 = sbr.rel (%p467) target = $region84
        $region83: #{tpu_custom_call.1} parent=71 // pred_region
          %470 = dma.done [#allocation7], 1024
        $region84: #{tpu_custom_call.1} parent=71 // pred_fallthru
          _
        // Predicated region
        $region85: #{tpu_custom_call.1} parent=71 // pred_check
          %p471 = pneg %p200
        $region86: #{tpu_custom_call.1} parent=71 // pred_check_branch
          %473 = sbr.rel (%p471) target = $region88
        $region87: #{tpu_custom_call.1} parent=71 // pred_region
          %474 = dma.done [#allocation10], 2048
        $region88: #{tpu_custom_call.1} parent=71 // pred_fallthru
          _
        // Predicated region
        $region89: #{tpu_custom_call.1} parent=71 // pred_check
          %p475 = pneg %p242
        $region90: #{tpu_custom_call.1} parent=71 // pred_check_branch
          %477 = sbr.rel (%p475) target = $region92
        $region91: #{tpu_custom_call.1} parent=71 // pred_region
          %478 = dma.done [#allocation10], 2048
        $region92: #{tpu_custom_call.1} parent=71 // pred_fallthru
          _
        %s479 = sand.u32 %s40, 1
        %s480 = scalar_lea.sflag [#allocation4], %s479
        %s481 = sand.u32 %s40, 1
        %s482 = smul.addr %s481, 16
        %s483 = scalar_lea.vmem [#allocation3], %s482
        %p484 = pneg %p53
        %p485 = pneg %p50
        %p486 = pneg %p74
        %p487 = pneg %p71
        %p488 = pneg %p95
        %p489 = pneg %p92
        %p490 = pneg %p116
        %p491 = pneg %p113
        %p492 = pneg %p137
        %p493 = pneg %p134
        %p494 = pneg %p158
        %p495 = pneg %p155
        %p496 = pneg %p179
        %p497 = pneg %p176
        %p498 = pneg %p200
        %p499 = pneg %p197
        %p500 = pneg %p221
        %p501 = pneg %p218
        %p502 = pneg %p242
        %p503 = pneg %p239
        %p504 = pneg %p263
        %p505 = pneg %p260
        %p506 = pneg %p284
        %p507 = pneg %p281
        %p508 = pneg %p305
        %p509 = pneg %p302
        %p510 = pneg %p331
        %p511 = pneg %p328
        %s512 = sand.u32 %s318, 1
        %s513 = scalar_lea.sflag [#allocation5], %s512
        %s514 = sand.u32 %s318, 1
        %s515 = smul.addr %s514, 16
        %s516 = scalar_lea.vmem [#allocation12], %s515
        %s517 = smul.u32 2, %s32
        %s518 = smul.u32 2, %s32
        %v520 = vld [vmem:[%s458] sm:$0xff]
        %v521 = vld [vmem:[%s458 + $0x8] sm:$0xff]
        %v522 = vpack.c.bf16 %v521, %v520
        %v523 = vld [vmem:[#allocation6] sm:$0xff]
        %v524 = vld [vmem:[#allocation6 + $0x8] sm:$0xf]
        %v525 = vld [vmem:[#allocation6 + $0xc] sm:$0xff]
        %v526 = vld [vmem:[#allocation6 + $0x14] sm:$0xf]
        %v527 = vld [vmem:[#allocation6 + $0x18] sm:$0xff]
        %v528 = vld [vmem:[#allocation6 + $0x20] sm:$0xf]
        %v529 = vld [vmem:[#allocation6 + $0x24] sm:$0xff]
        %v530 = vld [vmem:[#allocation6 + $0x2c] sm:$0xf]
        %v531 = vld [vmem:[#allocation6 + $0x30] sm:$0xff]
        %v532 = vld [vmem:[#allocation6 + $0x38] sm:$0xf]
        %v533 = vld [vmem:[#allocation6 + $0x3c] sm:$0xff]
        %v534 = vld [vmem:[#allocation6 + $0x44] sm:$0xf]
        %v535 = vld [vmem:[#allocation6 + $0x48] sm:$0xff]
        %v536 = vld [vmem:[#allocation6 + $0x50] sm:$0xf]
        %v537 = vld [vmem:[#allocation6 + $0x54] sm:$0xff]
        %v538 = vld [vmem:[#allocation6 + $0x5c] sm:$0xf]
        %v539 = vld [vmem:[#allocation6 + $0x60] sm:$0xff]
        %v540 = vld [vmem:[#allocation6 + $0x68] sm:$0xf]
        %v541 = vld [vmem:[#allocation6 + $0x6c] sm:$0xff]
        %v542 = vld [vmem:[#allocation6 + $0x74] sm:$0xf]
        %v543 = vld [vmem:[#allocation6 + $0x78] sm:$0xff]
        %v544 = vld [vmem:[#allocation6 + $0x80] sm:$0xf]
        %v545 = vld [vmem:[#allocation6 + $0x84] sm:$0xff]
        %v546 = vld [vmem:[#allocation6 + $0x8c] sm:$0xf]
        %v547 = vld [vmem:[#allocation6 + $0x90] sm:$0xff]
        %v548 = vld [vmem:[#allocation6 + $0x98] sm:$0xf]
        %v549 = vld [vmem:[#allocation6 + $0x9c] sm:$0xff]
        %v550 = vld [vmem:[#allocation6 + $0xa4] sm:$0xf]
        %v551 = vld [vmem:[#allocation6 + $0xa8] sm:$0xff]
        %v552 = vld [vmem:[#allocation6 + $0xb0] sm:$0xf]
        %v553 = vld [vmem:[#allocation6 + $0xb4] sm:$0xff]
        %v554 = vld [vmem:[#allocation6 + $0xbc] sm:$0xf]
        %v555 = vld [vmem:[%s2] sm:$0x7]
        %v557 = vlaneseq
        %v558 = vshrl.u32 %v557, 7
        %v559 = vsub.s32 0, %v558
        %v560 = vrot.slane %v555, %v559
        %v561 = vlaneseq
        %v562 = vshrl.u32 %v561, 7
        %v563 = vsub.s32 1, %v562
        %v564 = vrot.slane %v555, %v563
        %v565 = vlaneseq
        %v566 = vshrl.u32 %v565, 7
        %v567 = vsub.s32 2, %v566
        %v568 = vrot.slane %v555, %v567
        %v604 = vunpack.c.l.b16 %v523
        %v605 = vunpack.c.h.b16 %v523
        %v606 = vunpack.c.l.b16 %v524
        %v607 = vunpack.c.l.b16 %v525
        %v608 = vunpack.c.h.b16 %v525
        %v609 = vunpack.c.l.b16 %v526
        %v610 = vunpack.c.l.b16 %v527
        %v611 = vunpack.c.h.b16 %v527
        %v612 = vunpack.c.l.b16 %v528
        %v613 = vunpack.c.l.b16 %v529
        %v614 = vunpack.c.h.b16 %v529
        %v615 = vunpack.c.l.b16 %v530
        %v616 = vunpack.c.l.b16 %v531
        %v617 = vunpack.c.h.b16 %v531
        %v618 = vunpack.c.l.b16 %v532
        %v619 = vunpack.c.l.b16 %v533
        %v620 = vunpack.c.h.b16 %v533
        %v621 = vunpack.c.l.b16 %v534
        %v622 = vunpack.c.l.b16 %v535
        %v623 = vunpack.c.h.b16 %v535
        %v624 = vunpack.c.l.b16 %v536
        %v625 = vunpack.c.l.b16 %v537
        %v626 = vunpack.c.h.b16 %v537
        %v627 = vunpack.c.l.b16 %v538
        %v628 = vunpack.c.l.b16 %v539
        %v629 = vunpack.c.h.b16 %v539
        %v630 = vunpack.c.l.b16 %v540
        %v631 = vunpack.c.l.b16 %v541
        %v632 = vunpack.c.h.b16 %v541
        %v633 = vunpack.c.l.b16 %v542
        %v634 = vunpack.c.l.b16 %v543
        %v635 = vunpack.c.h.b16 %v543
        %v636 = vunpack.c.l.b16 %v544
        %v637 = vunpack.c.l.b16 %v545
        %v638 = vunpack.c.h.b16 %v545
        %v639 = vunpack.c.l.b16 %v546
        %v640 = vunpack.c.l.b16 %v547
        %v641 = vunpack.c.h.b16 %v547
        %v642 = vunpack.c.l.b16 %v548
        %v643 = vunpack.c.l.b16 %v549
        %v644 = vunpack.c.h.b16 %v549
        %v645 = vunpack.c.l.b16 %v550
        %v646 = vunpack.c.l.b16 %v551
        %v647 = vunpack.c.h.b16 %v551
        %v648 = vunpack.c.l.b16 %v552
        %v649 = vunpack.c.l.b16 %v553
        %v650 = vunpack.c.h.b16 %v553
        %v651 = vunpack.c.l.b16 %v554
        %v652 = vpack.c.b16 %v607, %v604
        %v653 = vpack.c.b16 %v608, %v605
        %v654 = vpack.c.b16 %v609, %v606
        %v655 = vpack.c.b16 %v613, %v610
        %v656 = vpack.c.b16 %v614, %v611
        %v657 = vpack.c.b16 %v615, %v612
        %v658 = vpack.c.b16 %v619, %v616
        %v659 = vpack.c.b16 %v620, %v617
        %v660 = vpack.c.b16 %v621, %v618
        %v661 = vpack.c.b16 %v625, %v622
        %v662 = vpack.c.b16 %v626, %v623
        %v663 = vpack.c.b16 %v627, %v624
        %v664 = vpack.c.b16 %v631, %v628
        %v665 = vpack.c.b16 %v632, %v629
        %v666 = vpack.c.b16 %v633, %v630
        %v667 = vpack.c.b16 %v637, %v634
        %v668 = vpack.c.b16 %v638, %v635
        %v669 = vpack.c.b16 %v639, %v636
        %v670 = vpack.c.b16 %v643, %v640
        %v671 = vpack.c.b16 %v644, %v641
        %v672 = vpack.c.b16 %v645, %v642
        %v673 = vpack.c.b16 %v649, %v646
        %v674 = vpack.c.b16 %v650, %v647
        %v675 = vpack.c.b16 %v651, %v648
        %700 = vmatprep.subr.bf16.mxu0 %v674
        %701 = vmatpush1.bf16.msra.mxu0 %v673
        %702 = vmatprep.subr.bf16.mxu0 %v671
        %703 = vmatpush1.bf16.msra.mxu0 %v670
        %704 = vmatprep.subr.bf16.mxu0 %v668
        %705 = vmatpush1.bf16.msra.mxu0 %v667
        %706 = vmatprep.subr.bf16.mxu0 %v665
        %707 = vmatpush1.bf16.msra.mxu0 %v664
        %708 = vmatprep.subr.bf16.mxu0 %v662
        %709 = vmatpush1.bf16.msra.mxu0 %v661
        %710 = vmatprep.subr.bf16.mxu0 %v659
        %711 = vmatpush1.bf16.msra.mxu0 %v658
        %712 = vmatprep.subr.bf16.mxu0 %v656
        %713 = vmatpush1.bf16.msra.mxu0 %v655
        %714 = vmatprep.subr.bf16.mxu0 %v653
        %715 = vmatpush1.bf16.msra.mxu0 %v652
        %716 = vmatprep.subr.bf16.mxu0 0
        %717 = vmatpush2.bf16.msra.mxu0 0
        %718 = vmatprep.subr.bf16.mxu0 0
        %719 = vmatpush2.bf16.msra.mxu0 0
        %720 = vmatprep.subr.bf16.mxu0 0
        %721 = vmatpush2.bf16.msra.mxu0 0
        %722 = vmatprep.subr.bf16.mxu0 0
        %723 = vmatpush2.bf16.msra.mxu0 0
        %724 = vmatprep.subr.bf16.mxu0 0
        %725 = vmatpush2.bf16.msra.mxu0 0
        %726 = vmatprep.subr.bf16.mxu0 0
        %727 = vmatpush2.bf16.msra.mxu0 0
        %728 = vmatprep.subr.bf16.mxu0 0
        %729 = vmatpush2.bf16.msra.mxu0 0
        %730 = vmatprep.subr.bf16.mxu0 0
        %731 = vmatpush2.bf16.msra.mxu0 0
        %732 = vmatprep.mubr.bf16.mxu0 0
        %733 = vmatmul.mubr.bf16.gmra.mxu0 %v522
        %v734 = vpop.f32.mrf.mxu0
        %v735 = vadd.f32 %v560, %v734
        %v736 = vpop.f32.mrf.mxu0
        %v737 = vadd.f32 %v564, %v736
        %v738 = vpop.f32.mrf.mxu0
        %v739 = vadd.f32 %v560, %v738
        %v740 = vpop.f32.mrf.mxu0
        %v741 = vadd.f32 %v564, %v740
        %742 = vdwg.mxu0
        %743 = vmatprep.subr.bf16.mxu0 0
        %744 = vmatpush1.bf16.msra.mxu0 %v675
        %745 = vmatprep.subr.bf16.mxu0 0
        %746 = vmatpush1.bf16.msra.mxu0 %v672
        %747 = vmatprep.subr.bf16.mxu0 0
        %748 = vmatpush1.bf16.msra.mxu0 %v669
        %749 = vmatprep.subr.bf16.mxu0 0
        %750 = vmatpush1.bf16.msra.mxu0 %v666
        %751 = vmatprep.subr.bf16.mxu0 0
        %752 = vmatpush1.bf16.msra.mxu0 %v663
        %753 = vmatprep.subr.bf16.mxu0 0
        %754 = vmatpush1.bf16.msra.mxu0 %v660
        %755 = vmatprep.subr.bf16.mxu0 0
        %756 = vmatpush1.bf16.msra.mxu0 %v657
        %757 = vmatprep.subr.bf16.mxu0 0
        %758 = vmatpush1.bf16.msra.mxu0 %v654
        %759 = vmatprep.subr.bf16.mxu0 0
        %760 = vmatpush2.bf16.msra.mxu0 0
        %761 = vmatprep.subr.bf16.mxu0 0
        %762 = vmatpush2.bf16.msra.mxu0 0
        %763 = vmatprep.subr.bf16.mxu0 0
        %764 = vmatpush2.bf16.msra.mxu0 0
        %765 = vmatprep.subr.bf16.mxu0 0
        %766 = vmatpush2.bf16.msra.mxu0 0
        %767 = vmatprep.subr.bf16.mxu0 0
        %768 = vmatpush2.bf16.msra.mxu0 0
        %769 = vmatprep.subr.bf16.mxu0 0
        %770 = vmatpush2.bf16.msra.mxu0 0
        %771 = vmatprep.subr.bf16.mxu0 0
        %772 = vmatpush2.bf16.msra.mxu0 0
        %773 = vmatprep.subr.bf16.mxu0 0
        %774 = vmatpush2.bf16.msra.mxu0 0
        %775 = vmatprep.mubr.bf16.mxu0 0
        %776 = vmatmul.mubr.bf16.gmra.mxu0 %v522
        %v777 = vpop.f32.mrf.mxu0
        %v778 = vadd.f32 %v568, %v777
        %v779 = vpop.f32.mrf.mxu0
        %v780 = vpop.f32.mrf.mxu0
        %v781 = vadd.f32 %v568, %v780
        %v782 = vpop.f32.mrf.mxu0
        %783 = vdwg.mxu0
        %v784 = vpack.c.bf16 %v739, %v735
        %v785 = vpack.c.bf16 %v741, %v737
        %v786 = vpack.c.bf16 %v781, %v778
        %v788 = vunpack.c.l.b16 %v784
        %v789 = vunpack.c.h.b16 %v784
        %v790 = vpack.c.b16 %v788, %v788
        %v791 = vpack.c.b16 %v789, %v789
        %v793 = vunpack.c.l.b16 %v785
        %v794 = vunpack.c.h.b16 %v785
        %v795 = vpack.c.b16 %v793, %v793
        %v796 = vpack.c.b16 %v794, %v794
        %v798 = vunpack.c.l.b16 %v786
        %v799 = vunpack.c.h.b16 %v786
        %v800 = vpack.c.b16 %v798, %v798
        %v801 = vpack.c.b16 %v799, %v799
        %vm802 = vcmask 261120
        %v804 = vsel %vm802, %v790, 0
        %v807 = vsel %vm802, %v795, 0
        %809 = vmatprep.subr.bf16.mxu0 0
        %810 = vmatpush1.bf16.xpose.msra.mxu0 0
        %811 = vmatprep.subr.bf16.mxu0 0
        %812 = vmatpush1.bf16.xpose.msra.mxu0 0
        %813 = vmatprep.subr.bf16.mxu0 0
        %814 = vmatpush1.bf16.xpose.msra.mxu0 0
        %815 = vmatprep.subr.bf16.mxu0 0
        %816 = vmatpush1.bf16.xpose.msra.mxu0 0
        %817 = vmatprep.subr.bf16.mxu0 0
        %818 = vmatpush1.bf16.xpose.msra.mxu0 0
        %819 = vmatprep.subr.bf16.mxu0 0
        %820 = vmatpush1.bf16.xpose.msra.mxu0 0
        %821 = vmatprep.subr.bf16.mxu0 0
        %822 = vmatpush1.bf16.xpose.msra.mxu0 0
        %823 = vmatprep.subr.bf16.mxu0 0
        %824 = vmatpush1.bf16.xpose.msra.mxu0 %v807
        %825 = vmatprep.subr.bf16.mxu0 0
        %826 = vmatpush2.bf16.xpose.msra.mxu0 0
        %827 = vmatprep.subr.bf16.mxu0 0
        %828 = vmatpush2.bf16.xpose.msra.mxu0 0
        %829 = vmatprep.subr.bf16.mxu0 0
        %830 = vmatpush2.bf16.xpose.msra.mxu0 0
        %831 = vmatprep.subr.bf16.mxu0 0
        %832 = vmatpush2.bf16.xpose.msra.mxu0 0
        %833 = vmatprep.subr.bf16.mxu0 0
        %834 = vmatpush2.bf16.xpose.msra.mxu0 0
        %835 = vmatprep.subr.bf16.mxu0 0
        %836 = vmatpush2.bf16.xpose.msra.mxu0 0
        %837 = vmatprep.subr.bf16.mxu0 0
        %838 = vmatpush2.bf16.xpose.msra.mxu0 0
        %839 = vmatprep.subr.bf16.mxu0 0
        %840 = vmatpush2.bf16.xpose.msra.mxu0 0
        %841 = vmatprep.mubr.bf16.mxu0 0
        %842 = vmatmul.mubr.bf16.gmra.mxu0 %v804
        %v843 = vpop.f32.mrf.mxu0
        %v844 = vadd.f32 0.0, %v843
        %v845 = vpop.f32.mrf.mxu0
        %v846 = vpop.f32.mrf.mxu0
        %v847 = vpop.f32.mrf.mxu0
        %848 = vdwg.mxu0
        %v850 = vsel %vm802, %v791, 0
        %v853 = vsel %vm802, %v796, 0
        %855 = vmatprep.subr.bf16.mxu0 0
        %856 = vmatpush1.bf16.xpose.msra.mxu0 0
        %857 = vmatprep.subr.bf16.mxu0 0
        %858 = vmatpush1.bf16.xpose.msra.mxu0 0
        %859 = vmatprep.subr.bf16.mxu0 0
        %860 = vmatpush1.bf16.xpose.msra.mxu0 0
        %861 = vmatprep.subr.bf16.mxu0 0
        %862 = vmatpush1.bf16.xpose.msra.mxu0 0
        %863 = vmatprep.subr.bf16.mxu0 0
        %864 = vmatpush1.bf16.xpose.msra.mxu0 0
        %865 = vmatprep.subr.bf16.mxu0 0
        %866 = vmatpush1.bf16.xpose.msra.mxu0 0
        %867 = vmatprep.subr.bf16.mxu0 0
        %868 = vmatpush1.bf16.xpose.msra.mxu0 0
        %869 = vmatprep.subr.bf16.mxu0 0
        %870 = vmatpush1.bf16.xpose.msra.mxu0 %v853
        %871 = vmatprep.subr.bf16.mxu0 0
        %872 = vmatpush2.bf16.xpose.msra.mxu0 0
        %873 = vmatprep.subr.bf16.mxu0 0
        %874 = vmatpush2.bf16.xpose.msra.mxu0 0
        %875 = vmatprep.subr.bf16.mxu0 0
        %876 = vmatpush2.bf16.xpose.msra.mxu0 0
        %877 = vmatprep.subr.bf16.mxu0 0
        %878 = vmatpush2.bf16.xpose.msra.mxu0 0
        %879 = vmatprep.subr.bf16.mxu0 0
        %880 = vmatpush2.bf16.xpose.msra.mxu0 0
        %881 = vmatprep.subr.bf16.mxu0 0
        %882 = vmatpush2.bf16.xpose.msra.mxu0 0
        %883 = vmatprep.subr.bf16.mxu0 0
        %884 = vmatpush2.bf16.xpose.msra.mxu0 0
        %885 = vmatprep.subr.bf16.mxu0 0
        %886 = vmatpush2.bf16.xpose.msra.mxu0 0
        %887 = vmatprep.mubr.bf16.mxu0 0
        %888 = vmatmul.mubr.bf16.gmra.mxu0 %v850
        %v889 = vpop.f32.mrf.mxu0
        %v890 = vadd.f32 0.0, %v889
        %v891 = vpop.f32.mrf.mxu0
        %v892 = vpop.f32.mrf.mxu0
        %v893 = vpop.f32.mrf.mxu0
        %894 = vdwg.mxu0
        %vm895 = vcmask 64512
        %v896 = vsel %vm895, %v844, -inf
        %897 = vmax.xlane.f32.xlu0 %v896
        %v898 = vpop.xlane.xlu0 %897
        %v899 = vsel %vm895, %v890, -inf
        %900 = vmax.xlane.f32.xlu0 %v899
        %v901 = vpop.xlane.xlu0 %900
        %v902 = vsub.f32 %v844, %v898
        %v903 = vsub.f32 %v890, %v901
        %v904 = vmul.f32 %v902, 1.442695
        %v905 = vpow.pop %v904
        %v906 = vmul.f32 %v903, 1.442695
        %v907 = vpow.pop %v906
        %v908 = vsel %vm895, %v905, 0.0
        %909 = vadd.xlane.f32.xlu0 %v908
        %v910 = vpop.xlane.xlu0 %909
        %v911 = vsel %vm895, %v907, 0.0
        %912 = vadd.xlane.f32.xlu0 %v911
        %v913 = vpop.xlane.xlu0 %912
        %v914 = vrcp.pop %v910
        %v915 = vrcp.pop %v913
        %v916 = vmul.f32 %v905, %v914
        %v917 = vmul.f32 %v907, %v915
        %v918 = vpack.c.bf16 %v916, %v916
        %v919 = vpack.c.bf16 %v917, %v917
        %v921 = vsel %vm895, %v918, 0
        %vm923 = vcmask 1043456
        %v925 = vsel %vm923, %v800, 0
        %927 = vmatprep.subr.bf16.mxu0 0
        %928 = vmatpush1.bf16.msra.mxu0 0
        %929 = vmatprep.subr.bf16.mxu0 0
        %930 = vmatpush1.bf16.msra.mxu0 0
        %931 = vmatprep.subr.bf16.mxu0 0
        %932 = vmatpush1.bf16.msra.mxu0 0
        %933 = vmatprep.subr.bf16.mxu0 0
        %934 = vmatpush1.bf16.msra.mxu0 0
        %935 = vmatprep.subr.bf16.mxu0 0
        %936 = vmatpush1.bf16.msra.mxu0 0
        %937 = vmatprep.subr.bf16.mxu0 0
        %938 = vmatpush1.bf16.msra.mxu0 0
        %939 = vmatprep.subr.bf16.mxu0 0
        %940 = vmatpush1.bf16.msra.mxu0 0
        %941 = vmatprep.subr.bf16.mxu0 0
        %942 = vmatpush1.bf16.msra.mxu0 %v925
        %943 = vmatprep.subr.bf16.mxu0 0
        %944 = vmatpush2.bf16.msra.mxu0 0
        %945 = vmatprep.subr.bf16.mxu0 0
        %946 = vmatpush2.bf16.msra.mxu0 0
        %947 = vmatprep.subr.bf16.mxu0 0
        %948 = vmatpush2.bf16.msra.mxu0 0
        %949 = vmatprep.subr.bf16.mxu0 0
        %950 = vmatpush2.bf16.msra.mxu0 0
        %951 = vmatprep.subr.bf16.mxu0 0
        %952 = vmatpush2.bf16.msra.mxu0 0
        %953 = vmatprep.subr.bf16.mxu0 0
        %954 = vmatpush2.bf16.msra.mxu0 0
        %955 = vmatprep.subr.bf16.mxu0 0
        %956 = vmatpush2.bf16.msra.mxu0 0
        %957 = vmatprep.subr.bf16.mxu0 0
        %958 = vmatpush2.bf16.msra.mxu0 0
        %959 = vmatprep.mubr.bf16.mxu0 0
        %960 = vmatmul.mubr.bf16.gmra.mxu0 %v921
        %v961 = vpop.f32.mrf.mxu0
        %v962 = vadd.f32 0.0, %v961
        %v963 = vpop.f32.mrf.mxu0
        %v964 = vpop.f32.mrf.mxu0
        %v965 = vpop.f32.mrf.mxu0
        %966 = vdwg.mxu0
        %v968 = vsel %vm895, %v919, 0
        %v971 = vsel %vm923, %v801, 0
        %973 = vmatprep.subr.bf16.mxu0 0
        %974 = vmatpush1.bf16.msra.mxu0 0
        %975 = vmatprep.subr.bf16.mxu0 0
        %976 = vmatpush1.bf16.msra.mxu0 0
        %977 = vmatprep.subr.bf16.mxu0 0
        %978 = vmatpush1.bf16.msra.mxu0 0
        %979 = vmatprep.subr.bf16.mxu0 0
        %980 = vmatpush1.bf16.msra.mxu0 0
        %981 = vmatprep.subr.bf16.mxu0 0
        %982 = vmatpush1.bf16.msra.mxu0 0
        %983 = vmatprep.subr.bf16.mxu0 0
        %984 = vmatpush1.bf16.msra.mxu0 0
        %985 = vmatprep.subr.bf16.mxu0 0
        %986 = vmatpush1.bf16.msra.mxu0 0
        %987 = vmatprep.subr.bf16.mxu0 0
        %988 = vmatpush1.bf16.msra.mxu0 %v971
        %989 = vmatprep.subr.bf16.mxu0 0
        %990 = vmatpush2.bf16.msra.mxu0 0
        %991 = vmatprep.subr.bf16.mxu0 0
        %992 = vmatpush2.bf16.msra.mxu0 0
        %993 = vmatprep.subr.bf16.mxu0 0
        %994 = vmatpush2.bf16.msra.mxu0 0
        %995 = vmatprep.subr.bf16.mxu0 0
        %996 = vmatpush2.bf16.msra.mxu0 0
        %997 = vmatprep.subr.bf16.mxu0 0
        %998 = vmatpush2.bf16.msra.mxu0 0
        %999 = vmatprep.subr.bf16.mxu0 0
        %1000 = vmatpush2.bf16.msra.mxu0 0
        %1001 = vmatprep.subr.bf16.mxu0 0
        %1002 = vmatpush2.bf16.msra.mxu0 0
        %1003 = vmatprep.subr.bf16.mxu0 0
        %1004 = vmatpush2.bf16.msra.mxu0 0
        %1005 = vmatprep.mubr.bf16.mxu0 0
        %1006 = vmatmul.mubr.bf16.gmra.mxu0 %v968
        %v1007 = vpop.f32.mrf.mxu0
        %v1008 = vadd.f32 0.0, %v1007
        %v1009 = vpop.f32.mrf.mxu0
        %v1010 = vpop.f32.mrf.mxu0
        %v1011 = vpop.f32.mrf.mxu0
        %1012 = vdwg.mxu0
        %v1013 = vpack.c.bf16 %v1008, %v962
        %v1015 = vunpack.c.l.b16 %v1013
        %v1016 = vunpack.c.h.b16 %v1013
        %v1017 = vpack.c.b16 %v1015, %v1015
        %v1018 = vpack.c.b16 %v1016, %v1016
        %vm1021 = vcmask 257024
        %1022 = vst.msk [vmem:[#allocation2] sm:$0xf] %vm1021, %v1017
        %1023 = vst.msk [vmem:[#allocation2 + $0x4] sm:$0xf] %vm1021, %v1018
        %1024 = vrot.lane.b32.xlu0 %v790, 96
        %v1025 = vpop.permute.xlu0 %1024
        %1026 = vrot.lane.b32.xlu0 %v795, 96
        %v1027 = vpop.permute.xlu0 %1026
        %v1029 = vsel %vm802, %v1025, 0
        %v1032 = vsel %vm802, %v1027, 0
        %1034 = vmatprep.subr.bf16.mxu0 0
        %1035 = vmatpush1.bf16.xpose.msra.mxu0 0
        %1036 = vmatprep.subr.bf16.mxu0 0
        %1037 = vmatpush1.bf16.xpose.msra.mxu0 0
        %1038 = vmatprep.subr.bf16.mxu0 0
        %1039 = vmatpush1.bf16.xpose.msra.mxu0 0
        %1040 = vmatprep.subr.bf16.mxu0 0
        %1041 = vmatpush1.bf16.xpose.msra.mxu0 0
        %1042 = vmatprep.subr.bf16.mxu0 0
        %1043 = vmatpush1.bf16.xpose.msra.mxu0 0
        %1044 = vmatprep.subr.bf16.mxu0 0
        %1045 = vmatpush1.bf16.xpose.msra.mxu0 0
        %1046 = vmatprep.subr.bf16.mxu0 0
        %1047 = vmatpush1.bf16.xpose.msra.mxu0 0
        %1048 = vmatprep.subr.bf16.mxu0 0
        %1049 = vmatpush1.bf16.xpose.msra.mxu0 %v1032
        %1050 = vmatprep.subr.bf16.mxu0 0
        %1051 = vmatpush2.bf16.xpose.msra.mxu0 0
        %1052 = vmatprep.subr.bf16.mxu0 0
        %1053 = vmatpush2.bf16.xpose.msra.mxu0 0
        %1054 = vmatprep.subr.bf16.mxu0 0
        %1055 = vmatpush2.bf16.xpose.msra.mxu0 0
        %1056 = vmatprep.subr.bf16.mxu0 0
        %1057 = vmatpush2.bf16.xpose.msra.mxu0 0
        %1058 = vmatprep.subr.bf16.mxu0 0
        %1059 = vmatpush2.bf16.xpose.msra.mxu0 0
        %1060 = vmatprep.subr.bf16.mxu0 0
        %1061 = vmatpush2.bf16.xpose.msra.mxu0 0
        %1062 = vmatprep.subr.bf16.mxu0 0
        %1063 = vmatpush2.bf16.xpose.msra.mxu0 0
        %1064 = vmatprep.subr.bf16.mxu0 0
        %1065 = vmatpush2.bf16.xpose.msra.mxu0 0
        %1066 = vmatprep.mubr.bf16.mxu0 0
        %1067 = vmatmul.mubr.bf16.gmra.mxu0 %v1029
        %v1068 = vpop.f32.mrf.mxu0
        %v1069 = vadd.f32 0.0, %v1068
        %v1070 = vpop.f32.mrf.mxu0
        %v1071 = vpop.f32.mrf.mxu0
        %v1072 = vpop.f32.mrf.mxu0
        %1073 = vdwg.mxu0
        %1074 = vrot.lane.b32.xlu0 %v791, 96
        %v1075 = vpop.permute.xlu0 %1074
        %1076 = vrot.lane.b32.xlu0 %v796, 96
        %v1077 = vpop.permute.xlu0 %1076
        %v1079 = vsel %vm802, %v1075, 0
        %v1082 = vsel %vm802, %v1077, 0
        %1084 = vmatprep.subr.bf16.mxu0 0
        %1085 = vmatpush1.bf16.xpose.msra.mxu0 0
        %1086 = vmatprep.subr.bf16.mxu0 0
        %1087 = vmatpush1.bf16.xpose.msra.mxu0 0
        %1088 = vmatprep.subr.bf16.mxu0 0
        %1089 = vmatpush1.bf16.xpose.msra.mxu0 0
        %1090 = vmatprep.subr.bf16.mxu0 0
        %1091 = vmatpush1.bf16.xpose.msra.mxu0 0
        %1092 = vmatprep.subr.bf16.mxu0 0
        %1093 = vmatpush1.bf16.xpose.msra.mxu0 0
        %1094 = vmatprep.subr.bf16.mxu0 0
        %1095 = vmatpush1.bf16.xpose.msra.mxu0 0
        %1096 = vmatprep.subr.bf16.mxu0 0
        %1097 = vmatpush1.bf16.xpose.msra.mxu0 0
        %1098 = vmatprep.subr.bf16.mxu0 0
        %1099 = vmatpush1.bf16.xpose.msra.mxu0 %v1082
        %1100 = vmatprep.subr.bf16.mxu0 0
        %1101 = vmatpush2.bf16.xpose.msra.mxu0 0
        %1102 = vmatprep.subr.bf16.mxu0 0
        %1103 = vmatpush2.bf16.xpose.msra.mxu0 0
        %1104 = vmatprep.subr.bf16.mxu0 0
        %1105 = vmatpush2.bf16.xpose.msra.mxu0 0
        %1106 = vmatprep.subr.bf16.mxu0 0
        %1107 = vmatpush2.bf16.xpose.msra.mxu0 0
        %1108 = vmatprep.subr.bf16.mxu0 0
        %1109 = vmatpush2.bf16.xpose.msra.mxu0 0
        %1110 = vmatprep.subr.bf16.mxu0 0
        %1111 = vmatpush2.bf16.xpose.msra.mxu0 0
        %1112 = vmatprep.subr.bf16.mxu0 0
        %1113 = vmatpush2.bf16.xpose.msra.mxu0 0
        %1114 = vmatprep.subr.bf16.mxu0 0
        %1115 = vmatpush2.bf16.xpose.msra.mxu0 0
        %1116 = vmatprep.mubr.bf16.mxu0 0
        %1117 = vmatmul.mubr.bf16.gmra.mxu0 %v1079
        %v1118 = vpop.f32.mrf.mxu0
        %v1119 = vadd.f32 0.0, %v1118
        %v1120 = vpop.f32.mrf.mxu0
        %v1121 = vpop.f32.mrf.mxu0
        %v1122 = vpop.f32.mrf.mxu0
        %1123 = vdwg.mxu0
        %v1124 = vsel %vm895, %v1069, -inf
        %1125 = vmax.xlane.f32.xlu0 %v1124
        %v1126 = vpop.xlane.xlu0 %1125
        %v1127 = vsel %vm895, %v1119, -inf
        %1128 = vmax.xlane.f32.xlu0 %v1127
        %v1129 = vpop.xlane.xlu0 %1128
        %v1130 = vsub.f32 %v1069, %v1126
        %v1131 = vsub.f32 %v1119, %v1129
        %v1132 = vmul.f32 %v1130, 1.442695
        %v1133 = vpow.pop %v1132
        %v1134 = vmul.f32 %v1131, 1.442695
        %v1135 = vpow.pop %v1134
        %v1136 = vsel %vm895, %v1133, 0.0
        %1137 = vadd.xlane.f32.xlu0 %v1136
        %v1138 = vpop.xlane.xlu0 %1137
        %v1139 = vsel %vm895, %v1135, 0.0
        %1140 = vadd.xlane.f32.xlu0 %v1139
        %v1141 = vpop.xlane.xlu0 %1140
        %v1142 = vrcp.pop %v1138
        %v1143 = vrcp.pop %v1141
        %v1144 = vmul.f32 %v1133, %v1142
        %v1145 = vmul.f32 %v1135, %v1143
        %v1146 = vpack.c.bf16 %v1144, %v1144
        %v1147 = vpack.c.bf16 %v1145, %v1145
        %1148 = vrot.lane.b32.xlu0 %v800, 96
        %v1149 = vpop.permute.xlu0 %1148
        %v1151 = vsel %vm895, %v1146, 0
        %v1154 = vsel %vm923, %v1149, 0
        %1156 = vmatprep.subr.bf16.mxu0 0
        %1157 = vmatpush1.bf16.msra.mxu0 0
        %1158 = vmatprep.subr.bf16.mxu0 0
        %1159 = vmatpush1.bf16.msra.mxu0 0
        %1160 = vmatprep.subr.bf16.mxu0 0
        %1161 = vmatpush1.bf16.msra.mxu0 0
        %1162 = vmatprep.subr.bf16.mxu0 0
        %1163 = vmatpush1.bf16.msra.mxu0 0
        %1164 = vmatprep.subr.bf16.mxu0 0
        %1165 = vmatpush1.bf16.msra.mxu0 0
        %1166 = vmatprep.subr.bf16.mxu0 0
        %1167 = vmatpush1.bf16.msra.mxu0 0
        %1168 = vmatprep.subr.bf16.mxu0 0
        %1169 = vmatpush1.bf16.msra.mxu0 0
        %1170 = vmatprep.subr.bf16.mxu0 0
        %1171 = vmatpush1.bf16.msra.mxu0 %v1154
        %1172 = vmatprep.subr.bf16.mxu0 0
        %1173 = vmatpush2.bf16.msra.mxu0 0
        %1174 = vmatprep.subr.bf16.mxu0 0
        %1175 = vmatpush2.bf16.msra.mxu0 0
        %1176 = vmatprep.subr.bf16.mxu0 0
        %1177 = vmatpush2.bf16.msra.mxu0 0
        %1178 = vmatprep.subr.bf16.mxu0 0
        %1179 = vmatpush2.bf16.msra.mxu0 0
        %1180 = vmatprep.subr.bf16.mxu0 0
        %1181 = vmatpush2.bf16.msra.mxu0 0
        %1182 = vmatprep.subr.bf16.mxu0 0
        %1183 = vmatpush2.bf16.msra.mxu0 0
        %1184 = vmatprep.subr.bf16.mxu0 0
        %1185 = vmatpush2.bf16.msra.mxu0 0
        %1186 = vmatprep.subr.bf16.mxu0 0
        %1187 = vmatpush2.bf16.msra.mxu0 0
        %1188 = vmatprep.mubr.bf16.mxu0 0
        %1189 = vmatmul.mubr.bf16.gmra.mxu0 %v1151
        %v1190 = vpop.f32.mrf.mxu0
        %v1191 = vadd.f32 0.0, %v1190
        %v1192 = vpop.f32.mrf.mxu0
        %v1193 = vpop.f32.mrf.mxu0
        %v1194 = vpop.f32.mrf.mxu0
        %1195 = vdwg.mxu0
        %1196 = vrot.lane.b32.xlu0 %v801, 96
        %v1197 = vpop.permute.xlu0 %1196
        %v1199 = vsel %vm895, %v1147, 0
        %v1202 = vsel %vm923, %v1197, 0
        %1204 = vmatprep.subr.bf16.mxu0 0
        %1205 = vmatpush1.bf16.msra.mxu0 0
        %1206 = vmatprep.subr.bf16.mxu0 0
        %1207 = vmatpush1.bf16.msra.mxu0 0
        %1208 = vmatprep.subr.bf16.mxu0 0
        %1209 = vmatpush1.bf16.msra.mxu0 0
        %1210 = vmatprep.subr.bf16.mxu0 0
        %1211 = vmatpush1.bf16.msra.mxu0 0
        %1212 = vmatprep.subr.bf16.mxu0 0
        %1213 = vmatpush1.bf16.msra.mxu0 0
        %1214 = vmatprep.subr.bf16.mxu0 0
        %1215 = vmatpush1.bf16.msra.mxu0 0
        %1216 = vmatprep.subr.bf16.mxu0 0
        %1217 = vmatpush1.bf16.msra.mxu0 0
        %1218 = vmatprep.subr.bf16.mxu0 0
        %1219 = vmatpush1.bf16.msra.mxu0 %v1202
        %1220 = vmatprep.subr.bf16.mxu0 0
        %1221 = vmatpush2.bf16.msra.mxu0 0
        %1222 = vmatprep.subr.bf16.mxu0 0
        %1223 = vmatpush2.bf16.msra.mxu0 0
        %1224 = vmatprep.subr.bf16.mxu0 0
        %1225 = vmatpush2.bf16.msra.mxu0 0
        %1226 = vmatprep.subr.bf16.mxu0 0
        %1227 = vmatpush2.bf16.msra.mxu0 0
        %1228 = vmatprep.subr.bf16.mxu0 0
        %1229 = vmatpush2.bf16.msra.mxu0 0
        %1230 = vmatprep.subr.bf16.mxu0 0
        %1231 = vmatpush2.bf16.msra.mxu0 0
        %1232 = vmatprep.subr.bf16.mxu0 0
        %1233 = vmatpush2.bf16.msra.mxu0 0
        %1234 = vmatprep.subr.bf16.mxu0 0
        %1235 = vmatpush2.bf16.msra.mxu0 0
        %1236 = vmatprep.mubr.bf16.mxu0 0
        %1237 = vmatmul.mubr.bf16.gmra.mxu0 %v1199
        %v1238 = vpop.f32.mrf.mxu0
        %v1239 = vadd.f32 0.0, %v1238
        %v1240 = vpop.f32.mrf.mxu0
        %v1241 = vpop.f32.mrf.mxu0
        %v1242 = vpop.f32.mrf.mxu0
        %1243 = vdwg.mxu0
        %v1244 = vpack.c.bf16 %v1239, %v1191
        %v1246 = vunpack.c.l.b16 %v1244
        %v1247 = vunpack.c.h.b16 %v1244
        %v1248 = vpack.c.b16 %v1246, %v1246
        %v1249 = vpack.c.b16 %v1247, %v1247
        %1250 = vrot.lane.b32.xlu0 %v1248, 32
        %v1251 = vpop.permute.xlu0 %1250
        %1252 = vrot.lane.b32.xlu0 %v1249, 32
        %v1253 = vpop.permute.xlu0 %1252
        %vm1256 = vcmask 519424
        %1257 = vst.msk [vmem:[#allocation2] sm:$0xf] %vm1256, %v1251
        %1258 = vst.msk [vmem:[#allocation2 + $0x4] sm:$0xf] %vm1256, %v1253
        %1259 = vrot.lane.b32.xlu0 %v790, 64
        %v1260 = vpop.permute.xlu0 %1259
        %1261 = vrot.lane.b32.xlu0 %v795, 64
        %v1262 = vpop.permute.xlu0 %1261
        %v1264 = vsel %vm802, %v1260, 0
        %v1267 = vsel %vm802, %v1262, 0
        %1269 = vmatprep.subr.bf16.mxu0 0
        %1270 = vmatpush1.bf16.xpose.msra.mxu0 0
        %1271 = vmatprep.subr.bf16.mxu0 0
        %1272 = vmatpush1.bf16.xpose.msra.mxu0 0
        %1273 = vmatprep.subr.bf16.mxu0 0
        %1274 = vmatpush1.bf16.xpose.msra.mxu0 0
        %1275 = vmatprep.subr.bf16.mxu0 0
        %1276 = vmatpush1.bf16.xpose.msra.mxu0 0
        %1277 = vmatprep.subr.bf16.mxu0 0
        %1278 = vmatpush1.bf16.xpose.msra.mxu0 0
        %1279 = vmatprep.subr.bf16.mxu0 0
        %1280 = vmatpush1.bf16.xpose.msra.mxu0 0
        %1281 = vmatprep.subr.bf16.mxu0 0
        %1282 = vmatpush1.bf16.xpose.msra.mxu0 0
        %1283 = vmatprep.subr.bf16.mxu0 0
        %1284 = vmatpush1.bf16.xpose.msra.mxu0 %v1267
        %1285 = vmatprep.subr.bf16.mxu0 0
        %1286 = vmatpush2.bf16.xpose.msra.mxu0 0
        %1287 = vmatprep.subr.bf16.mxu0 0
        %1288 = vmatpush2.bf16.xpose.msra.mxu0 0
        %1289 = vmatprep.subr.bf16.mxu0 0
        %1290 = vmatpush2.bf16.xpose.msra.mxu0 0
        %1291 = vmatprep.subr.bf16.mxu0 0
        %1292 = vmatpush2.bf16.xpose.msra.mxu0 0
        %1293 = vmatprep.subr.bf16.mxu0 0
        %1294 = vmatpush2.bf16.xpose.msra.mxu0 0
        %1295 = vmatprep.subr.bf16.mxu0 0
        %1296 = vmatpush2.bf16.xpose.msra.mxu0 0
        %1297 = vmatprep.subr.bf16.mxu0 0
        %1298 = vmatpush2.bf16.xpose.msra.mxu0 0
        %1299 = vmatprep.subr.bf16.mxu0 0
        %1300 = vmatpush2.bf16.xpose.msra.mxu0 0
        %1301 = vmatprep.mubr.bf16.mxu0 0
        %1302 = vmatmul.mubr.bf16.gmra.mxu0 %v1264
        %v1303 = vpop.f32.mrf.mxu0
        %v1304 = vadd.f32 0.0, %v1303
        %v1305 = vpop.f32.mrf.mxu0
        %v1306 = vpop.f32.mrf.mxu0
        %v1307 = vpop.f32.mrf.mxu0
        %1308 = vdwg.mxu0
        %1309 = vrot.lane.b32.xlu0 %v791, 64
        %v1310 = vpop.permute.xlu0 %1309
        %1311 = vrot.lane.b32.xlu0 %v796, 64
        %v1312 = vpop.permute.xlu0 %1311
        %v1314 = vsel %vm802, %v1310, 0
        %v1317 = vsel %vm802, %v1312, 0
        %1319 = vmatprep.subr.bf16.mxu0 0
        %1320 = vmatpush1.bf16.xpose.msra.mxu0 0
        %1321 = vmatprep.subr.bf16.mxu0 0
        %1322 = vmatpush1.bf16.xpose.msra.mxu0 0
        %1323 = vmatprep.subr.bf16.mxu0 0
        %1324 = vmatpush1.bf16.xpose.msra.mxu0 0
        %1325 = vmatprep.subr.bf16.mxu0 0
        %1326 = vmatpush1.bf16.xpose.msra.mxu0 0
        %1327 = vmatprep.subr.bf16.mxu0 0
        %1328 = vmatpush1.bf16.xpose.msra.mxu0 0
        %1329 = vmatprep.subr.bf16.mxu0 0
        %1330 = vmatpush1.bf16.xpose.msra.mxu0 0
        %1331 = vmatprep.subr.bf16.mxu0 0
        %1332 = vmatpush1.bf16.xpose.msra.mxu0 0
        %1333 = vmatprep.subr.bf16.mxu0 0
        %1334 = vmatpush1.bf16.xpose.msra.mxu0 %v1317
        %1335 = vmatprep.subr.bf16.mxu0 0
        %1336 = vmatpush2.bf16.xpose.msra.mxu0 0
        %1337 = vmatprep.subr.bf16.mxu0 0
        %1338 = vmatpush2.bf16.xpose.msra.mxu0 0
        %1339 = vmatprep.subr.bf16.mxu0 0
        %1340 = vmatpush2.bf16.xpose.msra.mxu0 0
        %1341 = vmatprep.subr.bf16.mxu0 0
        %1342 = vmatpush2.bf16.xpose.msra.mxu0 0
        %1343 = vmatprep.subr.bf16.mxu0 0
        %1344 = vmatpush2.bf16.xpose.msra.mxu0 0
        %1345 = vmatprep.subr.bf16.mxu0 0
        %1346 = vmatpush2.bf16.xpose.msra.mxu0 0
        %1347 = vmatprep.subr.bf16.mxu0 0
        %1348 = vmatpush2.bf16.xpose.msra.mxu0 0
        %1349 = vmatprep.subr.bf16.mxu0 0
        %1350 = vmatpush2.bf16.xpose.msra.mxu0 0
        %1351 = vmatprep.mubr.bf16.mxu0 0
        %1352 = vmatmul.mubr.bf16.gmra.mxu0 %v1314
        %v1353 = vpop.f32.mrf.mxu0
        %v1354 = vadd.f32 0.0, %v1353
        %v1355 = vpop.f32.mrf.mxu0
        %v1356 = vpop.f32.mrf.mxu0
        %v1357 = vpop.f32.mrf.mxu0
        %1358 = vdwg.mxu0
        %v1359 = vsel %vm895, %v1304, -inf
        %1360 = vmax.xlane.f32.xlu0 %v1359
        %v1361 = vpop.xlane.xlu0 %1360
        %v1362 = vsel %vm895, %v1354, -inf
        %1363 = vmax.xlane.f32.xlu0 %v1362
        %v1364 = vpop.xlane.xlu0 %1363
        %v1365 = vsub.f32 %v1304, %v1361
        %v1366 = vsub.f32 %v1354, %v1364
        %v1367 = vmul.f32 %v1365, 1.442695
        %v1368 = vpow.pop %v1367
        %v1369 = vmul.f32 %v1366, 1.442695
        %v1370 = vpow.pop %v1369
        %v1371 = vsel %vm895, %v1368, 0.0
        %1372 = vadd.xlane.f32.xlu0 %v1371
        %v1373 = vpop.xlane.xlu0 %1372
        %v1374 = vsel %vm895, %v1370, 0.0
        %1375 = vadd.xlane.f32.xlu0 %v1374
        %v1376 = vpop.xlane.xlu0 %1375
        %v1377 = vrcp.pop %v1373
        %v1378 = vrcp.pop %v1376
        %v1379 = vmul.f32 %v1368, %v1377
        %v1380 = vmul.f32 %v1370, %v1378
        %v1381 = vpack.c.bf16 %v1379, %v1379
        %v1382 = vpack.c.bf16 %v1380, %v1380
        %1383 = vrot.lane.b32.xlu0 %v800, 64
        %v1384 = vpop.permute.xlu0 %1383
        %v1386 = vsel %vm895, %v1381, 0
        %v1389 = vsel %vm923, %v1384, 0
        %1391 = vmatprep.subr.bf16.mxu0 0
        %1392 = vmatpush1.bf16.msra.mxu0 0
        %1393 = vmatprep.subr.bf16.mxu0 0
        %1394 = vmatpush1.bf16.msra.mxu0 0
        %1395 = vmatprep.subr.bf16.mxu0 0
        %1396 = vmatpush1.bf16.msra.mxu0 0
        %1397 = vmatprep.subr.bf16.mxu0 0
        %1398 = vmatpush1.bf16.msra.mxu0 0
        %1399 = vmatprep.subr.bf16.mxu0 0
        %1400 = vmatpush1.bf16.msra.mxu0 0
        %1401 = vmatprep.subr.bf16.mxu0 0
        %1402 = vmatpush1.bf16.msra.mxu0 0
        %1403 = vmatprep.subr.bf16.mxu0 0
        %1404 = vmatpush1.bf16.msra.mxu0 0
        %1405 = vmatprep.subr.bf16.mxu0 0
        %1406 = vmatpush1.bf16.msra.mxu0 %v1389
        %1407 = vmatprep.subr.bf16.mxu0 0
        %1408 = vmatpush2.bf16.msra.mxu0 0
        %1409 = vmatprep.subr.bf16.mxu0 0
        %1410 = vmatpush2.bf16.msra.mxu0 0
        %1411 = vmatprep.subr.bf16.mxu0 0
        %1412 = vmatpush2.bf16.msra.mxu0 0
        %1413 = vmatprep.subr.bf16.mxu0 0
        %1414 = vmatpush2.bf16.msra.mxu0 0
        %1415 = vmatprep.subr.bf16.mxu0 0
        %1416 = vmatpush2.bf16.msra.mxu0 0
        %1417 = vmatprep.subr.bf16.mxu0 0
        %1418 = vmatpush2.bf16.msra.mxu0 0
        %1419 = vmatprep.subr.bf16.mxu0 0
        %1420 = vmatpush2.bf16.msra.mxu0 0
        %1421 = vmatprep.subr.bf16.mxu0 0
        %1422 = vmatpush2.bf16.msra.mxu0 0
        %1423 = vmatprep.mubr.bf16.mxu0 0
        %1424 = vmatmul.mubr.bf16.gmra.mxu0 %v1386
        %v1425 = vpop.f32.mrf.mxu0
        %v1426 = vadd.f32 0.0, %v1425
        %v1427 = vpop.f32.mrf.mxu0
        %v1428 = vpop.f32.mrf.mxu0
        %v1429 = vpop.f32.mrf.mxu0
        %1430 = vdwg.mxu0
        %1431 = vrot.lane.b32.xlu0 %v801, 64
        %v1432 = vpop.permute.xlu0 %1431
        %v1434 = vsel %vm895, %v1382, 0
        %v1437 = vsel %vm923, %v1432, 0
        %1439 = vmatprep.subr.bf16.mxu0 0
        %1440 = vmatpush1.bf16.msra.mxu0 0
        %1441 = vmatprep.subr.bf16.mxu0 0
        %1442 = vmatpush1.bf16.msra.mxu0 0
        %1443 = vmatprep.subr.bf16.mxu0 0
        %1444 = vmatpush1.bf16.msra.mxu0 0
        %1445 = vmatprep.subr.bf16.mxu0 0
        %1446 = vmatpush1.bf16.msra.mxu0 0
        %1447 = vmatprep.subr.bf16.mxu0 0
        %1448 = vmatpush1.bf16.msra.mxu0 0
        %1449 = vmatprep.subr.bf16.mxu0 0
        %1450 = vmatpush1.bf16.msra.mxu0 0
        %1451 = vmatprep.subr.bf16.mxu0 0
        %1452 = vmatpush1.bf16.msra.mxu0 0
        %1453 = vmatprep.subr.bf16.mxu0 0
        %1454 = vmatpush1.bf16.msra.mxu0 %v1437
        %1455 = vmatprep.subr.bf16.mxu0 0
        %1456 = vmatpush2.bf16.msra.mxu0 0
        %1457 = vmatprep.subr.bf16.mxu0 0
        %1458 = vmatpush2.bf16.msra.mxu0 0
        %1459 = vmatprep.subr.bf16.mxu0 0
        %1460 = vmatpush2.bf16.msra.mxu0 0
        %1461 = vmatprep.subr.bf16.mxu0 0
        %1462 = vmatpush2.bf16.msra.mxu0 0
        %1463 = vmatprep.subr.bf16.mxu0 0
        %1464 = vmatpush2.bf16.msra.mxu0 0
        %1465 = vmatprep.subr.bf16.mxu0 0
        %1466 = vmatpush2.bf16.msra.mxu0 0
        %1467 = vmatprep.subr.bf16.mxu0 0
        %1468 = vmatpush2.bf16.msra.mxu0 0
        %1469 = vmatprep.subr.bf16.mxu0 0
        %1470 = vmatpush2.bf16.msra.mxu0 0
        %1471 = vmatprep.mubr.bf16.mxu0 0
        %1472 = vmatmul.mubr.bf16.gmra.mxu0 %v1434
        %v1473 = vpop.f32.mrf.mxu0
        %v1474 = vadd.f32 0.0, %v1473
        %v1475 = vpop.f32.mrf.mxu0
        %v1476 = vpop.f32.mrf.mxu0
        %v1477 = vpop.f32.mrf.mxu0
        %1478 = vdwg.mxu0
        %v1479 = vpack.c.bf16 %v1474, %v1426
        %v1481 = vunpack.c.l.b16 %v1479
        %v1482 = vunpack.c.h.b16 %v1479
        %v1483 = vpack.c.b16 %v1481, %v1481
        %v1484 = vpack.c.b16 %v1482, %v1482
        %1485 = vrot.lane.b32.xlu0 %v1483, 64
        %v1486 = vpop.permute.xlu0 %1485
        %1487 = vrot.lane.b32.xlu0 %v1484, 64
        %v1488 = vpop.permute.xlu0 %1487
        %vm1491 = vcmask 781824
        %1492 = vst.msk [vmem:[#allocation2] sm:$0xf] %vm1491, %v1486
        %1493 = vst.msk [vmem:[#allocation2 + $0x4] sm:$0xf] %vm1491, %v1488
        %1494 = vrot.lane.b32.xlu0 %v790, 32
        %v1495 = vpop.permute.xlu0 %1494
        %1496 = vrot.lane.b32.xlu0 %v795, 32
        %v1497 = vpop.permute.xlu0 %1496
        %v1499 = vsel %vm802, %v1495, 0
        %v1502 = vsel %vm802, %v1497, 0
        %1504 = vmatprep.subr.bf16.mxu0 0
        %1505 = vmatpush1.bf16.xpose.msra.mxu0 0
        %1506 = vmatprep.subr.bf16.mxu0 0
        %1507 = vmatpush1.bf16.xpose.msra.mxu0 0
        %1508 = vmatprep.subr.bf16.mxu0 0
        %1509 = vmatpush1.bf16.xpose.msra.mxu0 0
        %1510 = vmatprep.subr.bf16.mxu0 0
        %1511 = vmatpush1.bf16.xpose.msra.mxu0 0
        %1512 = vmatprep.subr.bf16.mxu0 0
        %1513 = vmatpush1.bf16.xpose.msra.mxu0 0
        %1514 = vmatprep.subr.bf16.mxu0 0
        %1515 = vmatpush1.bf16.xpose.msra.mxu0 0
        %1516 = vmatprep.subr.bf16.mxu0 0
        %1517 = vmatpush1.bf16.xpose.msra.mxu0 0
        %1518 = vmatprep.subr.bf16.mxu0 0
        %1519 = vmatpush1.bf16.xpose.msra.mxu0 %v1502
        %1520 = vmatprep.subr.bf16.mxu0 0
        %1521 = vmatpush2.bf16.xpose.msra.mxu0 0
        %1522 = vmatprep.subr.bf16.mxu0 0
        %1523 = vmatpush2.bf16.xpose.msra.mxu0 0
        %1524 = vmatprep.subr.bf16.mxu0 0
        %1525 = vmatpush2.bf16.xpose.msra.mxu0 0
        %1526 = vmatprep.subr.bf16.mxu0 0
        %1527 = vmatpush2.bf16.xpose.msra.mxu0 0
        %1528 = vmatprep.subr.bf16.mxu0 0
        %1529 = vmatpush2.bf16.xpose.msra.mxu0 0
        %1530 = vmatprep.subr.bf16.mxu0 0
        %1531 = vmatpush2.bf16.xpose.msra.mxu0 0
        %1532 = vmatprep.subr.bf16.mxu0 0
        %1533 = vmatpush2.bf16.xpose.msra.mxu0 0
        %1534 = vmatprep.subr.bf16.mxu0 0
        %1535 = vmatpush2.bf16.xpose.msra.mxu0 0
        %1536 = vmatprep.mubr.bf16.mxu0 0
        %1537 = vmatmul.mubr.bf16.gmra.mxu0 %v1499
        %v1538 = vpop.f32.mrf.mxu0
        %v1539 = vadd.f32 0.0, %v1538
        %v1540 = vpop.f32.mrf.mxu0
        %v1541 = vpop.f32.mrf.mxu0
        %v1542 = vpop.f32.mrf.mxu0
        %1543 = vdwg.mxu0
        %1544 = vrot.lane.b32.xlu0 %v791, 32
        %v1545 = vpop.permute.xlu0 %1544
        %1546 = vrot.lane.b32.xlu0 %v796, 32
        %v1547 = vpop.permute.xlu0 %1546
        %v1549 = vsel %vm802, %v1545, 0
        %v1552 = vsel %vm802, %v1547, 0
        %1554 = vmatprep.subr.bf16.mxu0 0
        %1555 = vmatpush1.bf16.xpose.msra.mxu0 0
        %1556 = vmatprep.subr.bf16.mxu0 0
        %1557 = vmatpush1.bf16.xpose.msra.mxu0 0
        %1558 = vmatprep.subr.bf16.mxu0 0
        %1559 = vmatpush1.bf16.xpose.msra.mxu0 0
        %1560 = vmatprep.subr.bf16.mxu0 0
        %1561 = vmatpush1.bf16.xpose.msra.mxu0 0
        %1562 = vmatprep.subr.bf16.mxu0 0
        %1563 = vmatpush1.bf16.xpose.msra.mxu0 0
        %1564 = vmatprep.subr.bf16.mxu0 0
        %1565 = vmatpush1.bf16.xpose.msra.mxu0 0
        %1566 = vmatprep.subr.bf16.mxu0 0
        %1567 = vmatpush1.bf16.xpose.msra.mxu0 0
        %1568 = vmatprep.subr.bf16.mxu0 0
        %1569 = vmatpush1.bf16.xpose.msra.mxu0 %v1552
        %1570 = vmatprep.subr.bf16.mxu0 0
        %1571 = vmatpush2.bf16.xpose.msra.mxu0 0
        %1572 = vmatprep.subr.bf16.mxu0 0
        %1573 = vmatpush2.bf16.xpose.msra.mxu0 0
        %1574 = vmatprep.subr.bf16.mxu0 0
        %1575 = vmatpush2.bf16.xpose.msra.mxu0 0
        %1576 = vmatprep.subr.bf16.mxu0 0
        %1577 = vmatpush2.bf16.xpose.msra.mxu0 0
        %1578 = vmatprep.subr.bf16.mxu0 0
        %1579 = vmatpush2.bf16.xpose.msra.mxu0 0
        %1580 = vmatprep.subr.bf16.mxu0 0
        %1581 = vmatpush2.bf16.xpose.msra.mxu0 0
        %1582 = vmatprep.subr.bf16.mxu0 0
        %1583 = vmatpush2.bf16.xpose.msra.mxu0 0
        %1584 = vmatprep.subr.bf16.mxu0 0
        %1585 = vmatpush2.bf16.xpose.msra.mxu0 0
        %1586 = vmatprep.mubr.bf16.mxu0 0
        %1587 = vmatmul.mubr.bf16.gmra.mxu0 %v1549
        %v1588 = vpop.f32.mrf.mxu0
        %v1589 = vadd.f32 0.0, %v1588
        %v1590 = vpop.f32.mrf.mxu0
        %v1591 = vpop.f32.mrf.mxu0
        %v1592 = vpop.f32.mrf.mxu0
        %1593 = vdwg.mxu0
        %v1594 = vsel %vm895, %v1539, -inf
        %1595 = vmax.xlane.f32.xlu0 %v1594
        %v1596 = vpop.xlane.xlu0 %1595
        %v1597 = vsel %vm895, %v1589, -inf
        %1598 = vmax.xlane.f32.xlu0 %v1597
        %v1599 = vpop.xlane.xlu0 %1598
        %v1600 = vsub.f32 %v1539, %v1596
        %v1601 = vsub.f32 %v1589, %v1599
        %v1602 = vmul.f32 %v1600, 1.442695
        %v1603 = vpow.pop %v1602
        %v1604 = vmul.f32 %v1601, 1.442695
        %v1605 = vpow.pop %v1604
        %v1606 = vsel %vm895, %v1603, 0.0
        %1607 = vadd.xlane.f32.xlu0 %v1606
        %v1608 = vpop.xlane.xlu0 %1607
        %v1609 = vsel %vm895, %v1605, 0.0
        %1610 = vadd.xlane.f32.xlu0 %v1609
        %v1611 = vpop.xlane.xlu0 %1610
        %v1612 = vrcp.pop %v1608
        %v1613 = vrcp.pop %v1611
        %v1614 = vmul.f32 %v1603, %v1612
        %v1615 = vmul.f32 %v1605, %v1613
        %v1616 = vpack.c.bf16 %v1614, %v1614
        %v1617 = vpack.c.bf16 %v1615, %v1615
        %1618 = vrot.lane.b32.xlu0 %v800, 32
        %v1619 = vpop.permute.xlu0 %1618
        %v1621 = vsel %vm895, %v1616, 0
        %v1624 = vsel %vm923, %v1619, 0
        %1626 = vmatprep.subr.bf16.mxu0 0
        %1627 = vmatpush1.bf16.msra.mxu0 0
        %1628 = vmatprep.subr.bf16.mxu0 0
        %1629 = vmatpush1.bf16.msra.mxu0 0
        %1630 = vmatprep.subr.bf16.mxu0 0
        %1631 = vmatpush1.bf16.msra.mxu0 0
        %1632 = vmatprep.subr.bf16.mxu0 0
        %1633 = vmatpush1.bf16.msra.mxu0 0
        %1634 = vmatprep.subr.bf16.mxu0 0
        %1635 = vmatpush1.bf16.msra.mxu0 0
        %1636 = vmatprep.subr.bf16.mxu0 0
        %1637 = vmatpush1.bf16.msra.mxu0 0
        %1638 = vmatprep.subr.bf16.mxu0 0
        %1639 = vmatpush1.bf16.msra.mxu0 0
        %1640 = vmatprep.subr.bf16.mxu0 0
        %1641 = vmatpush1.bf16.msra.mxu0 %v1624
        %1642 = vmatprep.subr.bf16.mxu0 0
        %1643 = vmatpush2.bf16.msra.mxu0 0
        %1644 = vmatprep.subr.bf16.mxu0 0
        %1645 = vmatpush2.bf16.msra.mxu0 0
        %1646 = vmatprep.subr.bf16.mxu0 0
        %1647 = vmatpush2.bf16.msra.mxu0 0
        %1648 = vmatprep.subr.bf16.mxu0 0
        %1649 = vmatpush2.bf16.msra.mxu0 0
        %1650 = vmatprep.subr.bf16.mxu0 0
        %1651 = vmatpush2.bf16.msra.mxu0 0
        %1652 = vmatprep.subr.bf16.mxu0 0
        %1653 = vmatpush2.bf16.msra.mxu0 0
        %1654 = vmatprep.subr.bf16.mxu0 0
        %1655 = vmatpush2.bf16.msra.mxu0 0
        %1656 = vmatprep.subr.bf16.mxu0 0
        %1657 = vmatpush2.bf16.msra.mxu0 0
        %1658 = vmatprep.mubr.bf16.mxu0 0
        %1659 = vmatmul.mubr.bf16.gmra.mxu0 %v1621
        %v1660 = vpop.f32.mrf.mxu0
        %v1661 = vadd.f32 0.0, %v1660
        %v1662 = vpop.f32.mrf.mxu0
        %v1663 = vpop.f32.mrf.mxu0
        %v1664 = vpop.f32.mrf.mxu0
        %1665 = vdwg.mxu0
        %1666 = vrot.lane.b32.xlu0 %v801, 32
        %v1667 = vpop.permute.xlu0 %1666
        %v1669 = vsel %vm895, %v1617, 0
        %v1672 = vsel %vm923, %v1667, 0
        %1674 = vmatprep.subr.bf16.mxu0 0
        %1675 = vmatpush1.bf16.msra.mxu0 0
        %1676 = vmatprep.subr.bf16.mxu0 0
        %1677 = vmatpush1.bf16.msra.mxu0 0
        %1678 = vmatprep.subr.bf16.mxu0 0
        %1679 = vmatpush1.bf16.msra.mxu0 0
        %1680 = vmatprep.subr.bf16.mxu0 0
        %1681 = vmatpush1.bf16.msra.mxu0 0
        %1682 = vmatprep.subr.bf16.mxu0 0
        %1683 = vmatpush1.bf16.msra.mxu0 0
        %1684 = vmatprep.subr.bf16.mxu0 0
        %1685 = vmatpush1.bf16.msra.mxu0 0
        %1686 = vmatprep.subr.bf16.mxu0 0
        %1687 = vmatpush1.bf16.msra.mxu0 0
        %1688 = vmatprep.subr.bf16.mxu0 0
        %1689 = vmatpush1.bf16.msra.mxu0 %v1672
        %1690 = vmatprep.subr.bf16.mxu0 0
        %1691 = vmatpush2.bf16.msra.mxu0 0
        %1692 = vmatprep.subr.bf16.mxu0 0
        %1693 = vmatpush2.bf16.msra.mxu0 0
        %1694 = vmatprep.subr.bf16.mxu0 0
        %1695 = vmatpush2.bf16.msra.mxu0 0
        %1696 = vmatprep.subr.bf16.mxu0 0
        %1697 = vmatpush2.bf16.msra.mxu0 0
        %1698 = vmatprep.subr.bf16.mxu0 0
        %1699 = vmatpush2.bf16.msra.mxu0 0
        %1700 = vmatprep.subr.bf16.mxu0 0
        %1701 = vmatpush2.bf16.msra.mxu0 0
        %1702 = vmatprep.subr.bf16.mxu0 0
        %1703 = vmatpush2.bf16.msra.mxu0 0
        %1704 = vmatprep.subr.bf16.mxu0 0
        %1705 = vmatpush2.bf16.msra.mxu0 0
        %1706 = vmatprep.mubr.bf16.mxu0 0
        %1707 = vmatmul.mubr.bf16.gmra.mxu0 %v1669
        %v1708 = vpop.f32.mrf.mxu0
        %v1709 = vadd.f32 0.0, %v1708
        %v1710 = vpop.f32.mrf.mxu0
        %v1711 = vpop.f32.mrf.mxu0
        %v1712 = vpop.f32.mrf.mxu0
        %1713 = vdwg.mxu0
        %v1714 = vpack.c.bf16 %v1709, %v1661
        %v1716 = vunpack.c.l.b16 %v1714
        %v1717 = vunpack.c.h.b16 %v1714
        %v1718 = vpack.c.b16 %v1716, %v1716
        %v1719 = vpack.c.b16 %v1717, %v1717
        %1720 = vrot.lane.b32.xlu0 %v1718, 96
        %v1721 = vpop.permute.xlu0 %1720
        %1722 = vrot.lane.b32.xlu0 %v1719, 96
        %v1723 = vpop.permute.xlu0 %1722
        %vm1726 = vcmask 1044224
        %1727 = vst.msk [vmem:[#allocation2] sm:$0xf] %vm1726, %v1721
        %1728 = vst.msk [vmem:[#allocation2 + $0x4] sm:$0xf] %vm1726, %v1723
        %v1729 = vld [vmem:[#allocation2] sm:$0xf]
        %v1730 = vld [vmem:[#allocation2 + $0x4] sm:$0xf]
        %v1731 = vld [vmem:[#allocation8] sm:$0xf]
        %v1732 = vld [vmem:[#allocation8 + $0x4] sm:$0xf]
        %v1733 = vld [vmem:[#allocation8 + $0x8] sm:$0xf]
        %v1734 = vld [vmem:[#allocation8 + $0xc] sm:$0xf]
        %v1735 = vld [vmem:[#allocation8 + $0x10] sm:$0xf]
        %v1736 = vld [vmem:[#allocation8 + $0x14] sm:$0xf]
        %v1737 = vld [vmem:[#allocation8 + $0x18] sm:$0xf]
        %v1738 = vld [vmem:[#allocation8 + $0x1c] sm:$0xf]
        %v1739 = vld [vmem:[#allocation8 + $0x20] sm:$0xf]
        %v1740 = vld [vmem:[#allocation8 + $0x24] sm:$0xf]
        %v1741 = vld [vmem:[#allocation8 + $0x28] sm:$0xf]
        %v1742 = vld [vmem:[#allocation8 + $0x2c] sm:$0xf]
        %v1743 = vld [vmem:[#allocation8 + $0x30] sm:$0xf]
        %v1744 = vld [vmem:[#allocation8 + $0x34] sm:$0xf]
        %v1745 = vld [vmem:[#allocation8 + $0x38] sm:$0xf]
        %v1746 = vld [vmem:[#allocation8 + $0x3c] sm:$0xf]
        %v1747 = vld [vmem:[%s4] sm:$0x1]
        %v1749 = vlaneseq
        %v1750 = vshrl.u32 %v1749, 7
        %v1751 = vsub.s32 0, %v1750
        %v1752 = vrot.slane %v1747, %v1751
        %v1756 = vunpack.c.l.b16 %v1729
        %v1757 = vunpack.c.l.b16 %v1730
        %v1758 = vpack.c.b16 %v1757, %v1756
        %v1776 = vunpack.c.l.b16 %v1731
        %v1777 = vunpack.c.l.b16 %v1732
        %v1778 = vunpack.c.l.b16 %v1733
        %v1779 = vunpack.c.l.b16 %v1734
        %v1780 = vunpack.c.l.b16 %v1735
        %v1781 = vunpack.c.l.b16 %v1736
        %v1782 = vunpack.c.l.b16 %v1737
        %v1783 = vunpack.c.l.b16 %v1738
        %v1784 = vunpack.c.l.b16 %v1739
        %v1785 = vunpack.c.l.b16 %v1740
        %v1786 = vunpack.c.l.b16 %v1741
        %v1787 = vunpack.c.l.b16 %v1742
        %v1788 = vunpack.c.l.b16 %v1743
        %v1789 = vunpack.c.l.b16 %v1744
        %v1790 = vunpack.c.l.b16 %v1745
        %v1791 = vunpack.c.l.b16 %v1746
        %v1792 = vpack.c.b16 %v1777, %v1776
        %v1793 = vpack.c.b16 %v1779, %v1778
        %v1794 = vpack.c.b16 %v1781, %v1780
        %v1795 = vpack.c.b16 %v1783, %v1782
        %v1796 = vpack.c.b16 %v1785, %v1784
        %v1797 = vpack.c.b16 %v1787, %v1786
        %v1798 = vpack.c.b16 %v1789, %v1788
        %v1799 = vpack.c.b16 %v1791, %v1790
        %1808 = vmatprep.subr.bf16.mxu0 0
        %1809 = vmatpush1.bf16.msra.mxu0 %v1799
        %1810 = vmatprep.subr.bf16.mxu0 0
        %1811 = vmatpush1.bf16.msra.mxu0 %v1798
        %1812 = vmatprep.subr.bf16.mxu0 0
        %1813 = vmatpush1.bf16.msra.mxu0 %v1797
        %1814 = vmatprep.subr.bf16.mxu0 0
        %1815 = vmatpush1.bf16.msra.mxu0 %v1796
        %1816 = vmatprep.subr.bf16.mxu0 0
        %1817 = vmatpush1.bf16.msra.mxu0 %v1795
        %1818 = vmatprep.subr.bf16.mxu0 0
        %1819 = vmatpush1.bf16.msra.mxu0 %v1794
        %1820 = vmatprep.subr.bf16.mxu0 0
        %1821 = vmatpush1.bf16.msra.mxu0 %v1793
        %1822 = vmatprep.subr.bf16.mxu0 0
        %1823 = vmatpush1.bf16.msra.mxu0 %v1792
        %1824 = vmatprep.subr.bf16.mxu0 0
        %1825 = vmatpush2.bf16.msra.mxu0 0
        %1826 = vmatprep.subr.bf16.mxu0 0
        %1827 = vmatpush2.bf16.msra.mxu0 0
        %1828 = vmatprep.subr.bf16.mxu0 0
        %1829 = vmatpush2.bf16.msra.mxu0 0
        %1830 = vmatprep.subr.bf16.mxu0 0
        %1831 = vmatpush2.bf16.msra.mxu0 0
        %1832 = vmatprep.subr.bf16.mxu0 0
        %1833 = vmatpush2.bf16.msra.mxu0 0
        %1834 = vmatprep.subr.bf16.mxu0 0
        %1835 = vmatpush2.bf16.msra.mxu0 0
        %1836 = vmatprep.subr.bf16.mxu0 0
        %1837 = vmatpush2.bf16.msra.mxu0 0
        %1838 = vmatprep.subr.bf16.mxu0 0
        %1839 = vmatpush2.bf16.msra.mxu0 0
        %1840 = vmatprep.mubr.bf16.mxu0 0
        %1841 = vmatmul.mubr.bf16.gmra.mxu0 %v1758
        %v1842 = vpop.f32.mrf.mxu0
        %v1843 = vadd.f32 %v1752, %v1842
        %v1844 = vpop.f32.mrf.mxu0
        %v1845 = vpop.f32.mrf.mxu0
        %v1846 = vadd.f32 %v1752, %v1845
        %v1847 = vpop.f32.mrf.mxu0
        %1848 = vdwg.mxu0
        %v1849 = vadd.f32 %v520, %v1843
        %v1850 = vadd.f32 %v521, %v1846
        %v1851 = vld [vmem:[%s5] sm:$0x1]
        %v1852 = vld [vmem:[%s6] sm:$0x1]
        %1853 = vadd.xlane.f32.xlu0 %v1849
        %v1854 = vpop.xlane.xlu0 %1853
        %1855 = vadd.xlane.f32.xlu0 %v1850
        %v1856 = vpop.xlane.xlu0 %1855
        %v1857 = vrcp.pop 128.0
        %v1858 = vmul.f32 %v1854, %v1857
        %v1859 = vmul.f32 %v1856, %v1857
        %v1860 = vmul.f32 %v1849, %v1849
        %v1861 = vmul.f32 %v1850, %v1850
        %1862 = vadd.xlane.f32.xlu0 %v1860
        %v1863 = vpop.xlane.xlu0 %1862
        %1864 = vadd.xlane.f32.xlu0 %v1861
        %v1865 = vpop.xlane.xlu0 %1864
        %v1866 = vmul.f32 %v1863, %v1857
        %v1867 = vmul.f32 %v1865, %v1857
        %v1868 = vmul.f32 %v1858, %v1858
        %v1869 = vmul.f32 %v1859, %v1859
        %v1870 = vsub.f32 %v1866, %v1868
        %v1871 = vsub.f32 %v1867, %v1869
        %v1872 = vmax.f32 %v1870, 0.0
        %v1873 = vmax.f32 %v1871, 0.0
        %v1874 = vsub.f32 %v1849, %v1858
        %v1875 = vsub.f32 %v1850, %v1859
        %v1876 = vadd.f32 %v1872, 1e-05
        %v1877 = vadd.f32 %v1873, 1e-05
        %v1878 = vrsqrt.pop %v1876
        %v1879 = vrsqrt.pop %v1877
        %v1880 = vmul.f32 %v1874, %v1878
        %v1881 = vmul.f32 %v1875, %v1879
        %v1883 = vlaneseq
        %v1884 = vshrl.u32 %v1883, 7
        %v1885 = vsub.s32 0, %v1884
        %v1886 = vrot.slane %v1851, %v1885
        %v1888 = vmul.f32 %v1880, %v1886
        %v1889 = vmul.f32 %v1881, %v1886
        %v1891 = vlaneseq
        %v1892 = vshrl.u32 %v1891, 7
        %v1893 = vsub.s32 0, %v1892
        %v1894 = vrot.slane %v1852, %v1893
        %v1896 = vadd.f32 %v1888, %v1894
        %v1897 = vadd.f32 %v1889, %v1894
        %v1898 = vpack.c.bf16 %v1897, %v1896
        %v1899 = vld [vmem:[#allocation9] sm:$0xff]
        %v1900 = vld [vmem:[#allocation9 + $0x8] sm:$0xff]
        %v1901 = vld [vmem:[#allocation9 + $0x10] sm:$0xff]
        %v1902 = vld [vmem:[#allocation9 + $0x18] sm:$0xff]
        %v1903 = vld [vmem:[#allocation9 + $0x20] sm:$0xff]
        %v1904 = vld [vmem:[#allocation9 + $0x28] sm:$0xff]
        %v1905 = vld [vmem:[#allocation9 + $0x30] sm:$0xff]
        %v1906 = vld [vmem:[#allocation9 + $0x38] sm:$0xff]
        %v1907 = vld [vmem:[#allocation9 + $0x40] sm:$0xff]
        %v1908 = vld [vmem:[#allocation9 + $0x48] sm:$0xff]
        %v1909 = vld [vmem:[#allocation9 + $0x50] sm:$0xff]
        %v1910 = vld [vmem:[#allocation9 + $0x58] sm:$0xff]
        %v1911 = vld [vmem:[#allocation9 + $0x60] sm:$0xff]
        %v1912 = vld [vmem:[#allocation9 + $0x68] sm:$0xff]
        %v1913 = vld [vmem:[#allocation9 + $0x70] sm:$0xff]
        %v1914 = vld [vmem:[#allocation9 + $0x78] sm:$0xff]
        %v1915 = vld [vmem:[%s8] sm:$0x3]
        %v1917 = vlaneseq
        %v1918 = vshrl.u32 %v1917, 7
        %v1919 = vsub.s32 0, %v1918
        %v1920 = vrot.slane %v1915, %v1919
        %v1921 = vlaneseq
        %v1922 = vshrl.u32 %v1921, 7
        %v1923 = vsub.s32 1, %v1922
        %v1924 = vrot.slane %v1915, %v1923
        %v1943 = vunpack.c.l.b16 %v1899
        %v1944 = vunpack.c.h.b16 %v1899
        %v1945 = vunpack.c.l.b16 %v1900
        %v1946 = vunpack.c.h.b16 %v1900
        %v1947 = vunpack.c.l.b16 %v1901
        %v1948 = vunpack.c.h.b16 %v1901
        %v1949 = vunpack.c.l.b16 %v1902
        %v1950 = vunpack.c.h.b16 %v1902
        %v1951 = vunpack.c.l.b16 %v1903
        %v1952 = vunpack.c.h.b16 %v1903
        %v1953 = vunpack.c.l.b16 %v1904
        %v1954 = vunpack.c.h.b16 %v1904
        %v1955 = vunpack.c.l.b16 %v1905
        %v1956 = vunpack.c.h.b16 %v1905
        %v1957 = vunpack.c.l.b16 %v1906
        %v1958 = vunpack.c.h.b16 %v1906
        %v1959 = vunpack.c.l.b16 %v1907
        %v1960 = vunpack.c.h.b16 %v1907
        %v1961 = vunpack.c.l.b16 %v1908
        %v1962 = vunpack.c.h.b16 %v1908
        %v1963 = vunpack.c.l.b16 %v1909
        %v1964 = vunpack.c.h.b16 %v1909
        %v1965 = vunpack.c.l.b16 %v1910
        %v1966 = vunpack.c.h.b16 %v1910
        %v1967 = vunpack.c.l.b16 %v1911
        %v1968 = vunpack.c.h.b16 %v1911
        %v1969 = vunpack.c.l.b16 %v1912
        %v1970 = vunpack.c.h.b16 %v1912
        %v1971 = vunpack.c.l.b16 %v1913
        %v1972 = vunpack.c.h.b16 %v1913
        %v1973 = vunpack.c.l.b16 %v1914
        %v1974 = vunpack.c.h.b16 %v1914
        %v1975 = vpack.c.b16 %v1945, %v1943
        %v1976 = vpack.c.b16 %v1946, %v1944
        %v1977 = vpack.c.b16 %v1949, %v1947
        %v1978 = vpack.c.b16 %v1950, %v1948
        %v1979 = vpack.c.b16 %v1953, %v1951
        %v1980 = vpack.c.b16 %v1954, %v1952
        %v1981 = vpack.c.b16 %v1957, %v1955
        %v1982 = vpack.c.b16 %v1958, %v1956
        %v1983 = vpack.c.b16 %v1961, %v1959
        %v1984 = vpack.c.b16 %v1962, %v1960
        %v1985 = vpack.c.b16 %v1965, %v1963
        %v1986 = vpack.c.b16 %v1966, %v1964
        %v1987 = vpack.c.b16 %v1969, %v1967
        %v1988 = vpack.c.b16 %v1970, %v1968
        %v1989 = vpack.c.b16 %v1973, %v1971
        %v1990 = vpack.c.b16 %v1974, %v1972
        %2007 = vmatprep.subr.bf16.mxu0 %v1990
        %2008 = vmatpush1.bf16.msra.mxu0 %v1989
        %2009 = vmatprep.subr.bf16.mxu0 %v1988
        %2010 = vmatpush1.bf16.msra.mxu0 %v1987
        %2011 = vmatprep.subr.bf16.mxu0 %v1986
        %2012 = vmatpush1.bf16.msra.mxu0 %v1985
        %2013 = vmatprep.subr.bf16.mxu0 %v1984
        %2014 = vmatpush1.bf16.msra.mxu0 %v1983
        %2015 = vmatprep.subr.bf16.mxu0 %v1982
        %2016 = vmatpush1.bf16.msra.mxu0 %v1981
        %2017 = vmatprep.subr.bf16.mxu0 %v1980
        %2018 = vmatpush1.bf16.msra.mxu0 %v1979
        %2019 = vmatprep.subr.bf16.mxu0 %v1978
        %2020 = vmatpush1.bf16.msra.mxu0 %v1977
        %2021 = vmatprep.subr.bf16.mxu0 %v1976
        %2022 = vmatpush1.bf16.msra.mxu0 %v1975
        %2023 = vmatprep.subr.bf16.mxu0 0
        %2024 = vmatpush2.bf16.msra.mxu0 0
        %2025 = vmatprep.subr.bf16.mxu0 0
        %2026 = vmatpush2.bf16.msra.mxu0 0
        %2027 = vmatprep.subr.bf16.mxu0 0
        %2028 = vmatpush2.bf16.msra.mxu0 0
        %2029 = vmatprep.subr.bf16.mxu0 0
        %2030 = vmatpush2.bf16.msra.mxu0 0
        %2031 = vmatprep.subr.bf16.mxu0 0
        %2032 = vmatpush2.bf16.msra.mxu0 0
        %2033 = vmatprep.subr.bf16.mxu0 0
        %2034 = vmatpush2.bf16.msra.mxu0 0
        %2035 = vmatprep.subr.bf16.mxu0 0
        %2036 = vmatpush2.bf16.msra.mxu0 0
        %2037 = vmatprep.subr.bf16.mxu0 0
        %2038 = vmatpush2.bf16.msra.mxu0 0
        %2039 = vmatprep.mubr.bf16.mxu0 0
        %2040 = vmatmul.mubr.bf16.gmra.mxu0 %v1898
        %v2041 = vpop.f32.mrf.mxu0
        %v2042 = vadd.f32 %v1920, %v2041
        %v2043 = vpop.f32.mrf.mxu0
        %v2044 = vadd.f32 %v1924, %v2043
        %v2045 = vpop.f32.mrf.mxu0
        %v2046 = vadd.f32 %v1920, %v2045
        %v2047 = vpop.f32.mrf.mxu0
        %v2048 = vadd.f32 %v1924, %v2047
        %2049 = vdwg.mxu0
        %v2050 = vmax.f32 %v2042, 0.0
        %v2051 = vmax.f32 %v2044, 0.0
        %v2052 = vmax.f32 %v2046, 0.0
        %v2053 = vmax.f32 %v2048, 0.0
        %v2054 = vpack.c.bf16 %v2052, %v2050
        %v2055 = vpack.c.bf16 %v2053, %v2051
        %v2056 = vld [vmem:[#allocation11] sm:$0xf]
        %v2057 = vld [vmem:[#allocation11 + $0x4] sm:$0xf]
        %v2058 = vld [vmem:[#allocation11 + $0x8] sm:$0xf]
        %v2059 = vld [vmem:[#allocation11 + $0xc] sm:$0xf]
        %v2060 = vld [vmem:[#allocation11 + $0x10] sm:$0xf]
        %v2061 = vld [vmem:[#allocation11 + $0x14] sm:$0xf]
        %v2062 = vld [vmem:[#allocation11 + $0x18] sm:$0xf]
        %v2063 = vld [vmem:[#allocation11 + $0x1c] sm:$0xf]
        %v2064 = vld [vmem:[#allocation11 + $0x20] sm:$0xf]
        %v2065 = vld [vmem:[#allocation11 + $0x24] sm:$0xf]
        %v2066 = vld [vmem:[#allocation11 + $0x28] sm:$0xf]
        %v2067 = vld [vmem:[#allocation11 + $0x2c] sm:$0xf]
        %v2068 = vld [vmem:[#allocation11 + $0x30] sm:$0xf]
        %v2069 = vld [vmem:[#allocation11 + $0x34] sm:$0xf]
        %v2070 = vld [vmem:[#allocation11 + $0x38] sm:$0xf]
        %v2071 = vld [vmem:[#allocation11 + $0x3c] sm:$0xf]
        %v2072 = vld [vmem:[#allocation11 + $0x40] sm:$0xf]
        %v2073 = vld [vmem:[#allocation11 + $0x44] sm:$0xf]
        %v2074 = vld [vmem:[#allocation11 + $0x48] sm:$0xf]
        %v2075 = vld [vmem:[#allocation11 + $0x4c] sm:$0xf]
        %v2076 = vld [vmem:[#allocation11 + $0x50] sm:$0xf]
        %v2077 = vld [vmem:[#allocation11 + $0x54] sm:$0xf]
        %v2078 = vld [vmem:[#allocation11 + $0x58] sm:$0xf]
        %v2079 = vld [vmem:[#allocation11 + $0x5c] sm:$0xf]
        %v2080 = vld [vmem:[#allocation11 + $0x60] sm:$0xf]
        %v2081 = vld [vmem:[#allocation11 + $0x64] sm:$0xf]
        %v2082 = vld [vmem:[#allocation11 + $0x68] sm:$0xf]
        %v2083 = vld [vmem:[#allocation11 + $0x6c] sm:$0xf]
        %v2084 = vld [vmem:[#allocation11 + $0x70] sm:$0xf]
        %v2085 = vld [vmem:[#allocation11 + $0x74] sm:$0xf]
        %v2086 = vld [vmem:[#allocation11 + $0x78] sm:$0xf]
        %v2087 = vld [vmem:[#allocation11 + $0x7c] sm:$0xf]
        %v2088 = vld [vmem:[%s10] sm:$0x1]
        %v2090 = vlaneseq
        %v2091 = vshrl.u32 %v2090, 7
        %v2092 = vsub.s32 0, %v2091
        %v2093 = vrot.slane %v2088, %v2092
        %v2127 = vunpack.c.l.b16 %v2056
        %v2128 = vunpack.c.l.b16 %v2057
        %v2129 = vunpack.c.l.b16 %v2058
        %v2130 = vunpack.c.l.b16 %v2059
        %v2131 = vunpack.c.l.b16 %v2060
        %v2132 = vunpack.c.l.b16 %v2061
        %v2133 = vunpack.c.l.b16 %v2062
        %v2134 = vunpack.c.l.b16 %v2063
        %v2135 = vunpack.c.l.b16 %v2064
        %v2136 = vunpack.c.l.b16 %v2065
        %v2137 = vunpack.c.l.b16 %v2066
        %v2138 = vunpack.c.l.b16 %v2067
        %v2139 = vunpack.c.l.b16 %v2068
        %v2140 = vunpack.c.l.b16 %v2069
        %v2141 = vunpack.c.l.b16 %v2070
        %v2142 = vunpack.c.l.b16 %v2071
        %v2143 = vunpack.c.l.b16 %v2072
        %v2144 = vunpack.c.l.b16 %v2073
        %v2145 = vunpack.c.l.b16 %v2074
        %v2146 = vunpack.c.l.b16 %v2075
        %v2147 = vunpack.c.l.b16 %v2076
        %v2148 = vunpack.c.l.b16 %v2077
        %v2149 = vunpack.c.l.b16 %v2078
        %v2150 = vunpack.c.l.b16 %v2079
        %v2151 = vunpack.c.l.b16 %v2080
        %v2152 = vunpack.c.l.b16 %v2081
        %v2153 = vunpack.c.l.b16 %v2082
        %v2154 = vunpack.c.l.b16 %v2083
        %v2155 = vunpack.c.l.b16 %v2084
        %v2156 = vunpack.c.l.b16 %v2085
        %v2157 = vunpack.c.l.b16 %v2086
        %v2158 = vunpack.c.l.b16 %v2087
        %v2159 = vpack.c.b16 %v2128, %v2127
        %v2160 = vpack.c.b16 %v2130, %v2129
        %v2161 = vpack.c.b16 %v2132, %v2131
        %v2162 = vpack.c.b16 %v2134, %v2133
        %v2163 = vpack.c.b16 %v2136, %v2135
        %v2164 = vpack.c.b16 %v2138, %v2137
        %v2165 = vpack.c.b16 %v2140, %v2139
        %v2166 = vpack.c.b16 %v2142, %v2141
        %v2167 = vpack.c.b16 %v2144, %v2143
        %v2168 = vpack.c.b16 %v2146, %v2145
        %v2169 = vpack.c.b16 %v2148, %v2147
        %v2170 = vpack.c.b16 %v2150, %v2149
        %v2171 = vpack.c.b16 %v2152, %v2151
        %v2172 = vpack.c.b16 %v2154, %v2153
        %v2173 = vpack.c.b16 %v2156, %v2155
        %v2174 = vpack.c.b16 %v2158, %v2157
        %2191 = vmatprep.subr.bf16.mxu0 0
        %2192 = vmatpush1.bf16.msra.mxu0 %v2166
        %2193 = vmatprep.subr.bf16.mxu0 0
        %2194 = vmatpush1.bf16.msra.mxu0 %v2165
        %2195 = vmatprep.subr.bf16.mxu0 0
        %2196 = vmatpush1.bf16.msra.mxu0 %v2164
        %2197 = vmatprep.subr.bf16.mxu0 0
        %2198 = vmatpush1.bf16.msra.mxu0 %v2163
        %2199 = vmatprep.subr.bf16.mxu0 0
        %2200 = vmatpush1.bf16.msra.mxu0 %v2162
        %2201 = vmatprep.subr.bf16.mxu0 0
        %2202 = vmatpush1.bf16.msra.mxu0 %v2161
        %2203 = vmatprep.subr.bf16.mxu0 0
        %2204 = vmatpush1.bf16.msra.mxu0 %v2160
        %2205 = vmatprep.subr.bf16.mxu0 0
        %2206 = vmatpush1.bf16.msra.mxu0 %v2159
        %2207 = vmatprep.subr.bf16.mxu0 0
        %2208 = vmatpush2.bf16.msra.mxu0 %v2174
        %2209 = vmatprep.subr.bf16.mxu0 0
        %2210 = vmatpush2.bf16.msra.mxu0 %v2173
        %2211 = vmatprep.subr.bf16.mxu0 0
        %2212 = vmatpush2.bf16.msra.mxu0 %v2172
        %2213 = vmatprep.subr.bf16.mxu0 0
        %2214 = vmatpush2.bf16.msra.mxu0 %v2171
        %2215 = vmatprep.subr.bf16.mxu0 0
        %2216 = vmatpush2.bf16.msra.mxu0 %v2170
        %2217 = vmatprep.subr.bf16.mxu0 0
        %2218 = vmatpush2.bf16.msra.mxu0 %v2169
        %2219 = vmatprep.subr.bf16.mxu0 0
        %2220 = vmatpush2.bf16.msra.mxu0 %v2168
        %2221 = vmatprep.subr.bf16.mxu0 0
        %2222 = vmatpush2.bf16.msra.mxu0 %v2167
        %2223 = vmatprep.mubr.bf16.mxu0 %v2055
        %2224 = vmatmul.mubr.bf16.gmra.mxu0 %v2054
        %v2225 = vpop.f32.mrf.mxu0
        %v2226 = vadd.f32 %v2093, %v2225
        %v2227 = vpop.f32.mrf.mxu0
        %v2228 = vpop.f32.mrf.mxu0
        %v2229 = vadd.f32 %v2093, %v2228
        %v2230 = vpop.f32.mrf.mxu0
        %2231 = vdwg.mxu0
        %v2232 = vadd.f32 %v1896, %v2226
        %v2233 = vadd.f32 %v1897, %v2229
        %v2234 = vld [vmem:[%s11] sm:$0x1]
        %v2235 = vld [vmem:[%s12] sm:$0x1]
        %2236 = vadd.xlane.f32.xlu0 %v2232
        %v2237 = vpop.xlane.xlu0 %2236
        %2238 = vadd.xlane.f32.xlu0 %v2233
        %v2239 = vpop.xlane.xlu0 %2238
        %v2240 = vmul.f32 %v2237, %v1857
        %v2241 = vmul.f32 %v2239, %v1857
        %v2242 = vmul.f32 %v2232, %v2232
        %v2243 = vmul.f32 %v2233, %v2233
        %2244 = vadd.xlane.f32.xlu0 %v2242
        %v2245 = vpop.xlane.xlu0 %2244
        %2246 = vadd.xlane.f32.xlu0 %v2243
        %v2247 = vpop.xlane.xlu0 %2246
        %v2248 = vmul.f32 %v2245, %v1857
        %v2249 = vmul.f32 %v2247, %v1857
        %v2250 = vmul.f32 %v2240, %v2240
        %v2251 = vmul.f32 %v2241, %v2241
        %v2252 = vsub.f32 %v2248, %v2250
        %v2253 = vsub.f32 %v2249, %v2251
        %v2254 = vmax.f32 %v2252, 0.0
        %v2255 = vmax.f32 %v2253, 0.0
        %v2256 = vsub.f32 %v2232, %v2240
        %v2257 = vsub.f32 %v2233, %v2241
        %v2258 = vadd.f32 %v2254, 1e-05
        %v2259 = vadd.f32 %v2255, 1e-05
        %v2260 = vrsqrt.pop %v2258
        %v2261 = vrsqrt.pop %v2259
        %v2262 = vmul.f32 %v2256, %v2260
        %v2263 = vmul.f32 %v2257, %v2261
        %v2265 = vlaneseq
        %v2266 = vshrl.u32 %v2265, 7
        %v2267 = vsub.s32 0, %v2266
        %v2268 = vrot.slane %v2234, %v2267
        %v2270 = vmul.f32 %v2262, %v2268
        %v2271 = vmul.f32 %v2263, %v2268
        %v2273 = vlaneseq
        %v2274 = vshrl.u32 %v2273, 7
        %v2275 = vsub.s32 0, %v2274
        %v2276 = vrot.slane %v2235, %v2275
        %v2278 = vadd.f32 %v2270, %v2276
        %v2279 = vadd.f32 %v2271, %v2276
        %2280 = vst [vmem:[%s516] sm:$0xff] %v2278
        %2281 = vst [vmem:[%s516 + $0x8] sm:$0xff] %v2279
        %s2282 = sand.u32 %s318, 1
        %s2283 = scalar_lea.sflag [#allocation5], %s2282
        %s2284 = sand.u32 %s318, 1
        %s2285 = smul.addr %s2284, 16
        %s2286 = scalar_lea.vmem [#allocation12], %s2285
        // Predicated region
        $region93: #{tpu_custom_call.1} parent=71 // pred_check
          %p2287 = pneg %p328
        $region94: #{tpu_custom_call.1} parent=71 // pred_check_branch
          %2289 = sbr.rel (%p2287) target = $region96
        $region95: #{tpu_custom_call.1} parent=71 // pred_region
          %s2290 = smul.u32 2, %s32
          %s2292 = ssub.s32 256, 256
          %2293 = vsyncadd %s2283, %s2292
          %s2294 = smul.addr %s2290, 128
          %s2295 = scalar_lea.hbm %s13, %s2294
          %s2296 = sshll.u32 %s2286, 4
          %s2297 = int_to_ptr.vmem [resolvable:$true] %s2296
          %2302 = dma.vmem_to_hbm [thread:$0]  %s2297, 256, %s2295, %s2283, 128, 128, 8
        $region96: #{tpu_custom_call.1} parent=71 // pred_fallthru
          _
      $region72: #{tpu_custom_call.1} parent=5 // pred_fallthru
        _
      %p2303 = scmp.le.s32.totalorder 2, %s27
      // Predicated region
      $region97: #{tpu_custom_call.1} parent=5 // pred_check
        %p2304 = pneg %p2303
      $region98: #{tpu_custom_call.1} parent=5 // pred_check_branch
        %2306 = sbr.rel (%p2304) target = $region100
      $region99: #{tpu_custom_call.1} parent=5 // pred_region
        %s2307 = ssub.s32 %s27, 2
        // Predicated region
        $region101: #{tpu_custom_call.1} parent=99 // pred_check
          %p2308 = pneg %p334
        $region102: #{tpu_custom_call.1} parent=99 // pred_check_branch
          %2310 = sbr.rel (%p2308) target = $region104
        $region103: #{tpu_custom_call.1} parent=99 // pred_region
          %s2311 = sand.u32 %s319, 1
          %s2312 = scalar_lea.sflag [#allocation5], %s2311
          %s2313 = sand.u32 %s319, 1
          %s2314 = smul.addr %s2313, 16
          %s2315 = scalar_lea.vmem [#allocation12], %s2314
          %2316 = dma.done %s2312, 256
        $region104: #{tpu_custom_call.1} parent=99 // pred_fallthru
          _
      $region100: #{tpu_custom_call.1} parent=5 // pred_fallthru
        _
    $region6: #{tpu_custom_call.1} parent=1 // loop_footer
      %s31 = sadd.s32 1, %s27
    $region7: #{tpu_custom_call.1} parent=1 // loop_footer_branch
      %26 = sbr.rel target = $region3
    $region8: #{tpu_custom_call.1} parent=1 // loop_exit
      _
    %2317 = vsyncpa [#allocation4], 1
    %s2318 = scalar_lea.sflag [#allocation4], 1
    %2319 = vsyncpa %s2318, 1
    %2320 = vsyncpa [#allocation7], 1
    %2321 = vsyncpa [#allocation10], 1
    %2322 = vsyncpa [#allocation5], 1
    %s2323 = scalar_lea.sflag [#allocation5], 1
    %2324 = vsyncpa %s2323, 1

</llo_original>
